<compile_context>
chip_gen: v7x
topology: tpu7x:2x2x1
jax: 0.10.0
libtpu: 0.0.40
codegen_flags: <defaults>
</compile_context>

<pallas_src>
import functools
import numpy as np
import jax
import jax.numpy as jnp
from jax.experimental import pallas as pl
from jax.experimental.pallas import tpu as pltpu

_LANE = 128
_SUBLANE = 8
_BN_EPS = 1e-5
_VMEM_LIMIT = 48 * 1024 * 1024     # < 64 MiB physical on v7x, well under 128 MiB v5e/v6e
_TILE_BUDGET = 24 * 1024 * 1024    # target double-buffered working set per grid step


def _round_up(x, m):
    return (x + m - 1) // m * m


def _choose_tiles(m_rows, kp, cp):
    """Tail-minimizing M tile (multiple of 8) that fits the per-step VMEM budget, plus
    a 2-way split of the tile sequence (megacore on v7x; harmless elsewhere)."""
    bytes_per_row = 4 * kp + 4 * cp              # double-buffered bf16 xp tile + bf16 y tile
    fixed = kp * cp * 2 + 16 * kp + 64 * cp      # resident bf16 weight + scale/shift + stats
    cap = max(_SUBLANE, (_TILE_BUDGET - fixed) // bytes_per_row)
    target = max(_SUBLANE, min(1024, (cap // _SUBLANE) * _SUBLANE))
    n_tiles = pl.cdiv(m_rows, target)
    tile_m = _round_up(pl.cdiv(m_rows, n_tiles), _SUBLANE)   # even-sized tiles, minimal tail
    n_tiles = pl.cdiv(m_rows, tile_m)
    n_splits = 2 if n_tiles >= 2 else 1
    n_tiles = _round_up(n_tiles, n_splits)
    return tile_m, n_splits, n_tiles // n_splits


# ---------------------------------------------------------------------------
# Fused conv step: [optional previous-stage BN+ReLU on the input tile] ->
# bf16 MXU matmul with f32 accumulation -> bf16 y store + masked single-pass
# sum / sum-of-squares into grid-resident per-core partial-stat blocks.
# ---------------------------------------------------------------------------
def _conv_stats_kernel(fuse_input_bn, tile_m, grid_inner, m_valid,
                       xp_ref, w_ref, sk_ref, sh_ref,
                       y_ref, sum_ref, sumsq_ref):
    s, i = pl.program_id(0), pl.program_id(1)

    if fuse_input_bn:
        # Previous stage's BatchNorm+ReLU, applied per replicated-K column (VPU work,
        # hidden under the input DMA which is the binding slot here).
        xin = jnp.maximum(
            xp_ref[...].astype(jnp.float32) * sk_ref[...] + sh_ref[...], 0.0
        ).astype(jnp.bfloat16)
    else:
        xin = xp_ref[...]

    y = jnp.dot(xin, w_ref[...], preferred_element_type=jnp.float32)
    y_ref[...] = y.astype(y_ref.dtype)            # bf16 writeback (half the HBM stream)

    @pl.when(i == 0)
    def _():
        sum_ref[...] = jnp.zeros_like(sum_ref)
        sumsq_ref[...] = jnp.zeros_like(sumsq_ref)

    # Mask padded tail rows out of the batch statistics (they are non-zero when the
    # input-side BN shift is fused in).
    row0 = (s * grid_inner + i) * tile_m
    rows = row0 + jax.lax.broadcasted_iota(jnp.int32, (tile_m, 1), 0)
    ym = jnp.where(rows < m_valid, y, 0.0)
    ps = jnp.sum(ym, axis=0, keepdims=True)
    pss = jnp.sum(ym * ym, axis=0, keepdims=True)
    sum_ref[...] += jnp.broadcast_to(ps, sum_ref.shape)
    sumsq_ref[...] += jnp.broadcast_to(pss, sumsq_ref.shape)


def _conv_stage(xp, w_mat, scale_k=None, shift_k=None):
    """xp: (M, K) bf16 patch matrix (K ordered kd, kh, kw, cin); w_mat: (K, Cout) f32.
    Optional scale_k / shift_k (K,) f32: previous stage's BN+ReLU fused in-kernel.
    Returns y (Mp, Cp) bf16, ysum (1, Cp) f32, ysumsq (1, Cp) f32, meta dict."""
    M, K = xp.shape
    Cout = w_mat.shape[1]
    Kp = _round_up(K, _SUBLANE)
    Cp = _round_up(Cout, _LANE)
    tile_m, n_splits, grid_inner = _choose_tiles(M, Kp, Cp)
    Mp = n_splits * grid_inner * tile_m

    xp_p = jnp.pad(xp, ((0, Mp - M), (0, Kp - K)))                      # single pad, bf16
    w_p = jnp.pad(w_mat, ((0, Kp - K), (0, Cp - Cout))).astype(jnp.bfloat16)
    fuse = scale_k is not None
    if fuse:
        sk = jnp.pad(scale_k, (0, Kp - K)).reshape(1, Kp).astype(jnp.float32)
        sh = jnp.pad(shift_k, (0, Kp - K)).reshape(1, Kp).astype(jnp.float32)
    else:
        sk = jnp.zeros((1, Kp), jnp.float32)
        sh = jnp.zeros((1, Kp), jnp.float32)

    kernel = functools.partial(_conv_stats_kernel, fuse, tile_m, grid_inner, M)
    y, psum, psumsq = pl.pallas_call(
        kernel,
        out_shape=(jax.ShapeDtypeStruct((Mp, Cp), jnp.bfloat16),
                   jax.ShapeDtypeStruct((n_splits * _SUBLANE, Cp), jnp.float32),
                   jax.ShapeDtypeStruct((n_splits * _SUBLANE, Cp), jnp.float32)),
        grid=(n_splits, grid_inner),
        in_specs=[pl.BlockSpec((tile_m, Kp), lambda s, i: (s * grid_inner + i, 0)),
                  pl.BlockSpec((Kp, Cp), lambda s, i: (0, 0)),    # resident weight
                  pl.BlockSpec((1, Kp), lambda s, i: (0, 0)),     # resident scale
                  pl.BlockSpec((1, Kp), lambda s, i: (0, 0))],    # resident shift
        out_specs=(pl.BlockSpec((tile_m, Cp), lambda s, i: (s * grid_inner + i, 0)),
                   pl.BlockSpec((_SUBLANE, Cp), lambda s, i: (s, 0)),   # per-core partials
                   pl.BlockSpec((_SUBLANE, Cp), lambda s, i: (s, 0))),
        compiler_params=pltpu.CompilerParams(
            dimension_semantics=("parallel", "arbitrary"),   # split shards across v7x cores
            vmem_limit_bytes=_VMEM_LIMIT),
    )(xp_p, w_p, sk, sh)

    # All 8 sublane rows of a per-core stat block carry the same total; take row 0 of
    # each core's block and reduce the (tiny) partials in XLA.
    ysum = psum.reshape(n_splits, _SUBLANE, Cp)[:, 0, :].sum(axis=0, keepdims=True)
    ysumsq = psumsq.reshape(n_splits, _SUBLANE, Cp)[:, 0, :].sum(axis=0, keepdims=True)
    meta = dict(M=M, Cout=Cout, Cp=Cp, tile_m=tile_m, n_tiles=n_splits * grid_inner)
    return y, ysum, ysumsq, meta


def _bn_coeffs(ysum, ysumsq, m, gamma, beta, cp):
    """Training-mode BatchNorm coefficients (biased variance), padded to Cp lanes.
    TODO(synk): E[y^2]-E[y]^2 in f32 can cancel catastrophically for |mean| >> std at
    large M; the max(.,0) clamp keeps it safe but a centered accumulation would be better."""
    cout = gamma.shape[0]
    g = jnp.pad(gamma, (0, cp - cout)).reshape(1, cp)
    b = jnp.pad(beta, (0, cp - cout)).reshape(1, cp)
    mean = ysum / m
    var = jnp.maximum(ysumsq / m - mean * mean, 0.0)
    scale = g * jax.lax.rsqrt(var + _BN_EPS)
    shift = b - mean * scale
    return scale, shift


# ---------------------------------------------------------------------------
# Final BatchNorm + ReLU (module output only): bf16 in, f32 out, lane-dense Cp.
# ---------------------------------------------------------------------------
def _bn_relu_kernel(y_ref, scale_ref, shift_ref, o_ref):
    o_ref[...] = jnp.maximum(
        y_ref[...].astype(jnp.float32) * scale_ref[...] + shift_ref[...], 0.0)


def _bn_relu(y, scale, shift, tile_m, n_tiles):
    Mp, Cp = y.shape
    return pl.pallas_call(
        _bn_relu_kernel,
        out_shape=jax.ShapeDtypeStruct((Mp, Cp), jnp.float32),
        grid=(n_tiles,),
        in_specs=[pl.BlockSpec((tile_m, Cp), lambda i: (i, 0)),
                  pl.BlockSpec((1, Cp), lambda i: (0, 0)),
                  pl.BlockSpec((1, Cp), lambda i: (0, 0))],
        out_specs=pl.BlockSpec((tile_m, Cp), lambda i: (i, 0)),
        compiler_params=pltpu.CompilerParams(
            dimension_semantics=("parallel",),
            vmem_limit_bytes=_VMEM_LIMIT),
    )(y, scale, shift)


def _im2col_bf16(x_ndhwc, kernel_size):
    """Channels-last patch extraction; cast to bf16 BEFORE the window concat so the
    (M, K) glue matrix only ever exists in bf16.  Returns ((M, K) bf16, out dims)."""
    kD, kH, kW = kernel_size
    N, D, H, W, C = x_ndhwc.shape
    Do, Ho, Wo = D - kD + 1, H - kH + 1, W - kW + 1
    xb = x_ndhwc.astype(jnp.bfloat16)
    # TODO(synk): pull the overlapping-window extraction into the conv kernel (manual
    # DMA over NDHWC) to remove the kD*kH*kW x inflation of input HBM reads.
    pats = [xb[:, kd:kd + Do, kh:kh + Ho, kw:kw + Wo, :]
            for kd in range(kD) for kh in range(kH) for kw in range(kW)]
    xp = jnp.concatenate(pats, axis=-1).reshape(N * Do * Ho * Wo, kD * kH * kW * C)
    return xp, (N, Do, Ho, Wo)


def init_block_params(key, in_channels, out_channels, kernel_size=(3, 3, 1)):
    """Mirrors nn.Conv3d default init (uniform +/- 1/sqrt(fan_in)); weights are
    pre-reshaped once into the (K, Cout) matmul layout used by the kernel."""
    kD, kH, kW = kernel_size
    k1, k2, k3, k4 = jax.random.split(key, 4)

    def conv_init(kw_key, kb_key, cin):
        fan_in = cin * kD * kH * kW
        bound = 1.0 / np.sqrt(fan_in)
        w = jax.random.uniform(kw_key, (out_channels, cin, kD, kH, kW),
                               jnp.float32, -bound, bound)
        b = jax.random.uniform(kb_key, (out_channels,), jnp.float32, -bound, bound)
        # (Cout, Cin, kD, kH, kW) -> (kD, kH, kW, Cin, Cout) -> (K, Cout), matching the
        # (kd, kh, kw, cin) ordering of the channels-last patch extraction.
        w_mat = jnp.transpose(w, (2, 3, 4, 1, 0)).reshape(cin * kD * kH * kW, out_channels)
        return w_mat, b

    # NOTE: as in the PyTorch module, conv2 is declared with `in_channels` input
    # channels, so the forward pass only type-checks when in_channels == out_channels.
    w1, b1 = conv_init(k1, k2, in_channels)
    w2, b2 = conv_init(k3, k4, in_channels)
    # TODO(synk): nn.BatchNorm3d(kernel_size) in the reference passes a tuple as
    # num_features (invalid in PyTorch); implemented as the intended
    # BatchNorm3d(out_channels) with training-mode batch statistics (gamma=1, beta=0).
    gamma = jnp.ones((out_channels,), jnp.float32)
    beta = jnp.zeros((out_channels,), jnp.float32)
    # b1/b2 are kept for interface parity but unused: a per-channel bias added before
    # training-mode BatchNorm is exactly cancelled by the batch-mean subtraction.
    return dict(w1=w1, b1=b1, g1=gamma, be1=beta,
                w2=w2, b2=b2, g2=gamma, be2=beta)


def block_forward(params, x, kernel_size=(3, 3, 1)):
    """x: (N, C, D, H, W) f32 -> (N, C, D-2(kD-1), H-2(kH-1), W-2(kW-1)) f32.
    conv1 -> BN1(train) -> ReLU -> conv2 -> BN2(train) -> ReLU; BN1+ReLU is fused into
    the conv2 kernel so the normalized intermediate activation never touches HBM."""
    kD, kH, kW = kernel_size
    taps = kD * kH * kW
    xc = jnp.transpose(x, (0, 2, 3, 4, 1))        # NCDHW -> NDHWC once, at the boundary

    # ---- stage 1: conv1 (+ single-pass batch stats) ----
    xp1, dims1 = _im2col_bf16(xc, kernel_size)
    y1, s1, ss1, meta1 = _conv_stage(xp1, params["w1"])
    scale1, shift1 = _bn_coeffs(s1, ss1, meta1["M"], params["g1"], params["be1"], meta1["Cp"])

    # ---- stage 2: fused BN1+ReLU1 + conv2 (+ batch stats) ----
    c1 = meta1["Cout"]
    n1, do1, ho1, wo1 = dims1
    y1_5d = y1[:meta1["M"], :c1].reshape(n1, do1, ho1, wo1, c1)   # bf16 stage boundary
    xp2, dims2 = _im2col_bf16(y1_5d, kernel_size)
    assert params["w2"].shape[0] == taps * c1, "Block requires in_channels == out_channels"
    sk1 = jnp.tile(scale1[0, :c1], taps)          # replicate per-channel BN1 coeffs over taps
    sh1 = jnp.tile(shift1[0, :c1], taps)
    y2, s2, ss2, meta2 = _conv_stage(xp2, params["w2"], sk1, sh1)
    scale2, shift2 = _bn_coeffs(s2, ss2, meta2["M"], params["g2"], params["be2"], meta2["Cp"])

    # ---- final BN2 + ReLU2 (f32 module output) ----
    out = _bn_relu(y2, scale2, shift2, meta2["tile_m"], meta2["n_tiles"])
    n2, do2, ho2, wo2 = dims2
    out = out[:meta2["M"], :meta2["Cout"]].reshape(n2, do2, ho2, wo2, meta2["Cout"])
    return jnp.transpose(out, (0, 4, 1, 2, 3))    # back to NCDHW at the output boundary


if __name__ == "__main__":
    N, C, D, H, W = 2, 4, 8, 8, 4     # in_channels == out_channels == 4
    key = jax.random.PRNGKey(0)
    kx, kp = jax.random.split(key)
    x = jax.random.normal(kx, (N, C, D, H, W), jnp.float32)
    params = init_block_params(kp, in_channels=C, out_channels=C, kernel_size=(3, 3, 1))

    fwd = jax.jit(lambda p, xx: block_forward(p, xx, kernel_size=(3, 3, 1)))
    y = fwd(params, x)
    jax.block_until_ready(y)

    assert y.shape == (N, C, D - 4, H - 4, W), y.shape
    assert bool(jnp.all(jnp.isfinite(y)))
    assert bool(jnp.all(y >= 0.0))    # ReLU output
    print("KERNEL_OK")
</pallas_src>

<mosaic_0001>
module attributes {stable_mosaic.version = 11 : i64} {
  func.func @_conv_stats_kernel(%arg0: i32, %arg1: i32, %arg2: memref<288x40xbf16, #tpu.memory_space<vmem>>, %arg3: memref<40x128xbf16, #tpu.memory_space<vmem>>, %arg4: memref<1x40xf32, #tpu.memory_space<vmem>>, %arg5: memref<1x40xf32, #tpu.memory_space<vmem>>, %arg6: memref<288x128xbf16, #tpu.memory_space<vmem>>, %arg7: memref<8x128xf32, #tpu.memory_space<vmem>>, %arg8: memref<8x128xf32, #tpu.memory_space<vmem>>) attributes {dimension_semantics = [#tpu.dimension_semantics<parallel>, #tpu.dimension_semantics<arbitrary>], iteration_bounds = array<i64: 1, 1>, scalar_prefetch = 0 : i64, scratch_operands = 0 : i64, tpu.core_type = #tpu.core_type<tc>, window_params = [{transform_indices = @transform_0, window_bounds = array<i64: 288, 40>}, {pipeline_mode = #tpu.pipeline_mode<synchronous>, transform_indices = @transform_1, window_bounds = array<i64: 40, 128>}, {pipeline_mode = #tpu.pipeline_mode<synchronous>, transform_indices = @transform_2, window_bounds = array<i64: 1, 40>}, {pipeline_mode = #tpu.pipeline_mode<synchronous>, transform_indices = @transform_3, window_bounds = array<i64: 1, 40>}, {transform_indices = @transform_4, window_bounds = array<i64: 288, 128>}, {transform_indices = @transform_5, window_bounds = array<i64: 8, 128>}, {transform_indices = @transform_6, window_bounds = array<i64: 8, 128>}]} {
    %c0 = arith.constant 0 : index
    %c0_0 = arith.constant 0 : index
    %0 = vector.load %arg2[%c0, %c0_0] : memref<288x40xbf16, #tpu.memory_space<vmem>>, vector<288x40xbf16>
    %c0_1 = arith.constant 0 : index
    %c0_2 = arith.constant 0 : index
    %1 = vector.load %arg3[%c0_1, %c0_2] : memref<40x128xbf16, #tpu.memory_space<vmem>>, vector<40x128xbf16>
    %cst = arith.constant dense<0.000000e+00> : vector<288x128xf32>
    %2 = tpu.matmul %0, %1, %cst {dimension_numbers = #tpu.dot_dimension_numbers<[1], [0], [0], [1], [0, 0, 1, 1], [], []>} : vector<288x40xbf16>, vector<40x128xbf16>, vector<288x128xf32> -> vector<288x128xf32>
    %3 = arith.truncf %2 : vector<288x128xf32> to vector<288x128xbf16>
    %c0_3 = arith.constant 0 : index
    %c0_4 = arith.constant 0 : index
    %4 = vector.load %arg6[%c0_3, %c0_4] : memref<288x128xbf16, #tpu.memory_space<vmem>>, vector<288x128xbf16>
    tpu.vector_store %arg6[%c0_3, %c0_4], %3 {strides = array<i32>} : memref<288x128xbf16, #tpu.memory_space<vmem>>, vector<288x128xbf16>,
    %c0_i32 = arith.constant 0 : i32
    %5 = arith.cmpi eq, %arg1, %c0_i32 : i32
    %6 = arith.extui %5 : i1 to i32
    %c0_i32_5 = arith.constant 0 : i32
    %7 = arith.cmpi ne, %6, %c0_i32_5 : i32
    scf.if %7 {
      %cst_18 = arith.constant 0.000000e+00 : f32
      %35 = vector.broadcast %cst_18 : f32 to vector<8x128xf32>
      %c0_19 = arith.constant 0 : index
      %c0_20 = arith.constant 0 : index
      %36 = vector.load %arg7[%c0_19, %c0_20] : memref<8x128xf32, #tpu.memory_space<vmem>>, vector<8x128xf32>
      tpu.vector_store %arg7[%c0_19, %c0_20], %35 {strides = array<i32>} : memref<8x128xf32, #tpu.memory_space<vmem>>, vector<8x128xf32>,
      %cst_21 = arith.constant 0.000000e+00 : f32
      %37 = vector.broadcast %cst_21 : f32 to vector<8x128xf32>
      %c0_22 = arith.constant 0 : index
      %c0_23 = arith.constant 0 : index
      %38 = vector.load %arg8[%c0_22, %c0_23] : memref<8x128xf32, #tpu.memory_space<vmem>>, vector<8x128xf32>
      tpu.vector_store %arg8[%c0_22, %c0_23], %37 {strides = array<i32>} : memref<8x128xf32, #tpu.memory_space<vmem>>, vector<8x128xf32>,
    } else {
    }
    %c1_i32 = arith.constant 1 : i32
    %8 = arith.muli %arg0, %c1_i32 : i32
    %9 = arith.addi %8, %arg1 : i32
    %c288_i32 = arith.constant 288 : i32
    %10 = arith.muli %9, %c288_i32 : i32
    %11 = tpu.iota {dimensions = array<i32: 0>} : vector<288x1xi32>
    %12 = vector.broadcast %10 : i32 to vector<288x1xi32>
    %13 = arith.addi %12, %11 : vector<288x1xi32>
    %c288_i32_6 = arith.constant 288 : i32
    %14 = vector.broadcast %c288_i32_6 : i32 to vector<288x1xi32>
    %15 = arith.cmpi slt, %13, %14 : vector<288x1xi32>
    %cst_7 = arith.constant 0.000000e+00 : f32
    %16 = vector.shape_cast %15 : vector<288x1xi1> to vector<288x1xi1>
    %17 = vector.broadcast %16 : vector<288x1xi1> to vector<288x128xi1>
    %18 = vector.broadcast %cst_7 : f32 to vector<288x128xf32>
    %19 = arith.select %17, %2, %18 : vector<288x128xi1>, vector<288x128xf32>
    %cst_8 = arith.constant dense<0.000000e+00> : vector<128xf32>
    %20 = vector.multi_reduction <add>, %19, %cst_8 [0] : vector<288x128xf32> to vector<128xf32>
    %21 = vector.shape_cast %20 : vector<128xf32> to vector<1x128xf32>
    %22 = arith.mulf %19, %19 : vector<288x128xf32>
    %cst_9 = arith.constant dense<0.000000e+00> : vector<128xf32>
    %23 = vector.multi_reduction <add>, %22, %cst_9 [0] : vector<288x128xf32> to vector<128xf32>
    %24 = vector.shape_cast %23 : vector<128xf32> to vector<1x128xf32>
    %c0_10 = arith.constant 0 : index
    %c0_11 = arith.constant 0 : index
    %25 = vector.load %arg7[%c0_10, %c0_11] : memref<8x128xf32, #tpu.memory_space<vmem>>, vector<8x128xf32>
    %26 = vector.shape_cast %21 : vector<1x128xf32> to vector<1x128xf32>
    %27 = vector.broadcast %26 : vector<1x128xf32> to vector<8x128xf32>
    %28 = arith.addf %25, %27 : vector<8x128xf32>
    %c0_12 = arith.constant 0 : index
    %c0_13 = arith.constant 0 : index
    %29 = vector.load %arg7[%c0_12, %c0_13] : memref<8x128xf32, #tpu.memory_space<vmem>>, vector<8x128xf32>
    tpu.vector_store %arg7[%c0_12, %c0_13], %28 {strides = array<i32>} : memref<8x128xf32, #tpu.memory_space<vmem>>, vector<8x128xf32>,
    %c0_14 = arith.constant 0 : index
    %c0_15 = arith.constant 0 : index
    %30 = vector.load %arg8[%c0_14, %c0_15] : memref<8x128xf32, #tpu.memory_space<vmem>>, vector<8x128xf32>
    %31 = vector.shape_cast %24 : vector<1x128xf32> to vector<1x128xf32>
    %32 = vector.broadcast %31 : vector<1x128xf32> to vector<8x128xf32>
    %33 = arith.addf %30, %32 : vector<8x128xf32>
    %c0_16 = arith.constant 0 : index
    %c0_17 = arith.constant 0 : index
    %34 = vector.load %arg8[%c0_16, %c0_17] : memref<8x128xf32, #tpu.memory_space<vmem>>, vector<8x128xf32>
    tpu.vector_store %arg8[%c0_16, %c0_17], %33 {strides = array<i32>} : memref<8x128xf32, #tpu.memory_space<vmem>>, vector<8x128xf32>,
    return
  }
  func.func @transform_0(%arg0: i32, %arg1: i32) -> (i32, i32) {
    %c1_i32 = arith.constant 1 : i32
    %0 = arith.muli %arg0, %c1_i32 : i32
    %1 = arith.addi %0, %arg1 : i32
    %c0_i32 = arith.constant 0 : i32
    %c0_i32_0 = arith.constant 0 : i32
    return %1, %c0_i32 : i32, i32
  }
  func.func @transform_1(%arg0: i32, %arg1: i32) -> (i32, i32) {
    %c0_i32 = arith.constant 0 : i32
    %c0_i32_0 = arith.constant 0 : i32
    %c0_i32_1 = arith.constant 0 : i32
    return %c0_i32, %c0_i32_0 : i32, i32
  }
  func.func @transform_2(%arg0: i32, %arg1: i32) -> (i32, i32) {
    %c0_i32 = arith.constant 0 : i32
    %c0_i32_0 = arith.constant 0 : i32
    %c0_i32_1 = arith.constant 0 : i32
    return %c0_i32, %c0_i32_0 : i32, i32
  }
  func.func @transform_3(%arg0: i32, %arg1: i32) -> (i32, i32) {
    %c0_i32 = arith.constant 0 : i32
    %c0_i32_0 = arith.constant 0 : i32
    %c0_i32_1 = arith.constant 0 : i32
    return %c0_i32, %c0_i32_0 : i32, i32
  }
  func.func @transform_4(%arg0: i32, %arg1: i32) -> (i32, i32) {
    %c1_i32 = arith.constant 1 : i32
    %0 = arith.muli %arg0, %c1_i32 : i32
    %1 = arith.addi %0, %arg1 : i32
    %c0_i32 = arith.constant 0 : i32
    %c0_i32_0 = arith.constant 0 : i32
    return %1, %c0_i32 : i32, i32
  }
  func.func @transform_5(%arg0: i32, %arg1: i32) -> (i32, i32) {
    %c0_i32 = arith.constant 0 : i32
    %c0_i32_0 = arith.constant 0 : i32
    return %arg0, %c0_i32 : i32, i32
  }
  func.func @transform_6(%arg0: i32, %arg1: i32) -> (i32, i32) {
    %c0_i32 = arith.constant 0 : i32
    %c0_i32_0 = arith.constant 0 : i32
    return %arg0, %c0_i32 : i32, i32
  }
}

module attributes {stable_mosaic.version = 11 : i64} {
  func.func @_conv_stats_kernel(%arg0: i32, %arg1: i32, %arg2: memref<128x40xbf16, #tpu.memory_space<vmem>>, %arg3: memref<40x128xbf16, #tpu.memory_space<vmem>>, %arg4: memref<1x40xf32, #tpu.memory_space<vmem>>, %arg5: memref<1x40xf32, #tpu.memory_space<vmem>>, %arg6: memref<128x128xbf16, #tpu.memory_space<vmem>>, %arg7: memref<8x128xf32, #tpu.memory_space<vmem>>, %arg8: memref<8x128xf32, #tpu.memory_space<vmem>>) attributes {dimension_semantics = [#tpu.dimension_semantics<parallel>, #tpu.dimension_semantics<arbitrary>], iteration_bounds = array<i64: 1, 1>, scalar_prefetch = 0 : i64, scratch_operands = 0 : i64, tpu.core_type = #tpu.core_type<tc>, window_params = [{transform_indices = @transform_0, window_bounds = array<i64: 128, 40>}, {pipeline_mode = #tpu.pipeline_mode<synchronous>, transform_indices = @transform_1, window_bounds = array<i64: 40, 128>}, {pipeline_mode = #tpu.pipeline_mode<synchronous>, transform_indices = @transform_2, window_bounds = array<i64: 1, 40>}, {pipeline_mode = #tpu.pipeline_mode<synchronous>, transform_indices = @transform_3, window_bounds = array<i64: 1, 40>}, {transform_indices = @transform_4, window_bounds = array<i64: 128, 128>}, {transform_indices = @transform_5, window_bounds = array<i64: 8, 128>}, {transform_indices = @transform_6, window_bounds = array<i64: 8, 128>}]} {
    %c0 = arith.constant 0 : index
    %c0_0 = arith.constant 0 : index
    %0 = vector.load %arg2[%c0, %c0_0] : memref<128x40xbf16, #tpu.memory_space<vmem>>, vector<128x40xbf16>
    %1 = arith.extf %0 : vector<128x40xbf16> to vector<128x40xf32>
    %c0_1 = arith.constant 0 : index
    %c0_2 = arith.constant 0 : index
    %2 = vector.load %arg4[%c0_1, %c0_2] : memref<1x40xf32, #tpu.memory_space<vmem>>, vector<1x40xf32>
    %3 = vector.broadcast %2 : vector<1x40xf32> to vector<128x40xf32>
    %4 = arith.mulf %1, %3 : vector<128x40xf32>
    %c0_3 = arith.constant 0 : index
    %c0_4 = arith.constant 0 : index
    %5 = vector.load %arg5[%c0_3, %c0_4] : memref<1x40xf32, #tpu.memory_space<vmem>>, vector<1x40xf32>
    %6 = vector.broadcast %5 : vector<1x40xf32> to vector<128x40xf32>
    %7 = arith.addf %4, %6 : vector<128x40xf32>
    %cst = arith.constant 0.000000e+00 : f32
    %8 = vector.broadcast %cst : f32 to vector<128x40xf32>
    %9 = arith.maximumf %7, %8 : vector<128x40xf32>
    %10 = arith.truncf %9 : vector<128x40xf32> to vector<128x40xbf16>
    %c0_5 = arith.constant 0 : index
    %c0_6 = arith.constant 0 : index
    %11 = vector.load %arg3[%c0_5, %c0_6] : memref<40x128xbf16, #tpu.memory_space<vmem>>, vector<40x128xbf16>
    %cst_7 = arith.constant dense<0.000000e+00> : vector<128x128xf32>
    %12 = tpu.matmul %10, %11, %cst_7 {dimension_numbers = #tpu.dot_dimension_numbers<[1], [0], [0], [1], [0, 0, 1, 1], [], []>} : vector<128x40xbf16>, vector<40x128xbf16>, vector<128x128xf32> -> vector<128x128xf32>
    %13 = arith.truncf %12 : vector<128x128xf32> to vector<128x128xbf16>
    %c0_8 = arith.constant 0 : index
    %c0_9 = arith.constant 0 : index
    %14 = vector.load %arg6[%c0_8, %c0_9] : memref<128x128xbf16, #tpu.memory_space<vmem>>, vector<128x128xbf16>
    tpu.vector_store %arg6[%c0_8, %c0_9], %13 {strides = array<i32>} : memref<128x128xbf16, #tpu.memory_space<vmem>>, vector<128x128xbf16>,
    %c0_i32 = arith.constant 0 : i32
    %15 = arith.cmpi eq, %arg1, %c0_i32 : i32
    %16 = arith.extui %15 : i1 to i32
    %c0_i32_10 = arith.constant 0 : i32
    %17 = arith.cmpi ne, %16, %c0_i32_10 : i32
    scf.if %17 {
      %cst_23 = arith.constant 0.000000e+00 : f32
      %45 = vector.broadcast %cst_23 : f32 to vector<8x128xf32>
      %c0_24 = arith.constant 0 : index
      %c0_25 = arith.constant 0 : index
      %46 = vector.load %arg7[%c0_24, %c0_25] : memref<8x128xf32, #tpu.memory_space<vmem>>, vector<8x128xf32>
      tpu.vector_store %arg7[%c0_24, %c0_25], %45 {strides = array<i32>} : memref<8x128xf32, #tpu.memory_space<vmem>>, vector<8x128xf32>,
      %cst_26 = arith.constant 0.000000e+00 : f32
      %47 = vector.broadcast %cst_26 : f32 to vector<8x128xf32>
      %c0_27 = arith.constant 0 : index
      %c0_28 = arith.constant 0 : index
      %48 = vector.load %arg8[%c0_27, %c0_28] : memref<8x128xf32, #tpu.memory_space<vmem>>, vector<8x128xf32>
      tpu.vector_store %arg8[%c0_27, %c0_28], %47 {strides = array<i32>} : memref<8x128xf32, #tpu.memory_space<vmem>>, vector<8x128xf32>,
    } else {
    }
    %c1_i32 = arith.constant 1 : i32
    %18 = arith.muli %arg0, %c1_i32 : i32
    %19 = arith.addi %18, %arg1 : i32
    %c128_i32 = arith.constant 128 : i32
    %20 = arith.muli %19, %c128_i32 : i32
    %21 = tpu.iota {dimensions = array<i32: 0>} : vector<128x1xi32>
    %22 = vector.broadcast %20 : i32 to vector<128x1xi32>
    %23 = arith.addi %22, %21 : vector<128x1xi32>
    %c128_i32_11 = arith.constant 128 : i32
    %24 = vector.broadcast %c128_i32_11 : i32 to vector<128x1xi32>
    %25 = arith.cmpi slt, %23, %24 : vector<128x1xi32>
    %cst_12 = arith.constant 0.000000e+00 : f32
    %26 = vector.shape_cast %25 : vector<128x1xi1> to vector<128x1xi1>
    %27 = vector.broadcast %26 : vector<128x1xi1> to vector<128x128xi1>
    %28 = vector.broadcast %cst_12 : f32 to vector<128x128xf32>
    %29 = arith.select %27, %12, %28 : vector<128x128xi1>, vector<128x128xf32>
    %cst_13 = arith.constant dense<0.000000e+00> : vector<128xf32>
    %30 = vector.multi_reduction <add>, %29, %cst_13 [0] : vector<128x128xf32> to vector<128xf32>
    %31 = vector.shape_cast %30 : vector<128xf32> to vector<1x128xf32>
    %32 = arith.mulf %29, %29 : vector<128x128xf32>
    %cst_14 = arith.constant dense<0.000000e+00> : vector<128xf32>
    %33 = vector.multi_reduction <add>, %32, %cst_14 [0] : vector<128x128xf32> to vector<128xf32>
    %34 = vector.shape_cast %33 : vector<128xf32> to vector<1x128xf32>
    %c0_15 = arith.constant 0 : index
    %c0_16 = arith.constant 0 : index
    %35 = vector.load %arg7[%c0_15, %c0_16] : memref<8x128xf32, #tpu.memory_space<vmem>>, vector<8x128xf32>
    %36 = vector.shape_cast %31 : vector<1x128xf32> to vector<1x128xf32>
    %37 = vector.broadcast %36 : vector<1x128xf32> to vector<8x128xf32>
    %38 = arith.addf %35, %37 : vector<8x128xf32>
    %c0_17 = arith.constant 0 : index
    %c0_18 = arith.constant 0 : index
    %39 = vector.load %arg7[%c0_17, %c0_18] : memref<8x128xf32, #tpu.memory_space<vmem>>, vector<8x128xf32>
    tpu.vector_store %arg7[%c0_17, %c0_18], %38 {strides = array<i32>} : memref<8x128xf32, #tpu.memory_space<vmem>>, vector<8x128xf32>,
    %c0_19 = arith.constant 0 : index
    %c0_20 = arith.constant 0 : index
    %40 = vector.load %arg8[%c0_19, %c0_20] : memref<8x128xf32, #tpu.memory_space<vmem>>, vector<8x128xf32>
    %41 = vector.shape_cast %34 : vector<1x128xf32> to vector<1x128xf32>
    %42 = vector.broadcast %41 : vector<1x128xf32> to vector<8x128xf32>
    %43 = arith.addf %40, %42 : vector<8x128xf32>
    %c0_21 = arith.constant 0 : index
    %c0_22 = arith.constant 0 : index
    %44 = vector.load %arg8[%c0_21, %c0_22] : memref<8x128xf32, #tpu.memory_space<vmem>>, vector<8x128xf32>
    tpu.vector_store %arg8[%c0_21, %c0_22], %43 {strides = array<i32>} : memref<8x128xf32, #tpu.memory_space<vmem>>, vector<8x128xf32>,
    return
  }
  func.func @transform_0(%arg0: i32, %arg1: i32) -> (i32, i32) {
    %c1_i32 = arith.constant 1 : i32
    %0 = arith.muli %arg0, %c1_i32 : i32
    %1 = arith.addi %0, %arg1 : i32
    %c0_i32 = arith.constant 0 : i32
    %c0_i32_0 = arith.constant 0 : i32
    return %1, %c0_i32 : i32, i32
  }
  func.func @transform_1(%arg0: i32, %arg1: i32) -> (i32, i32) {
    %c0_i32 = arith.constant 0 : i32
    %c0_i32_0 = arith.constant 0 : i32
    %c0_i32_1 = arith.constant 0 : i32
    return %c0_i32, %c0_i32_0 : i32, i32
  }
  func.func @transform_2(%arg0: i32, %arg1: i32) -> (i32, i32) {
    %c0_i32 = arith.constant 0 : i32
    %c0_i32_0 = arith.constant 0 : i32
    %c0_i32_1 = arith.constant 0 : i32
    return %c0_i32, %c0_i32_0 : i32, i32
  }
  func.func @transform_3(%arg0: i32, %arg1: i32) -> (i32, i32) {
    %c0_i32 = arith.constant 0 : i32
    %c0_i32_0 = arith.constant 0 : i32
    %c0_i32_1 = arith.constant 0 : i32
    return %c0_i32, %c0_i32_0 : i32, i32
  }
  func.func @transform_4(%arg0: i32, %arg1: i32) -> (i32, i32) {
    %c1_i32 = arith.constant 1 : i32
    %0 = arith.muli %arg0, %c1_i32 : i32
    %1 = arith.addi %0, %arg1 : i32
    %c0_i32 = arith.constant 0 : i32
    %c0_i32_0 = arith.constant 0 : i32
    return %1, %c0_i32 : i32, i32
  }
  func.func @transform_5(%arg0: i32, %arg1: i32) -> (i32, i32) {
    %c0_i32 = arith.constant 0 : i32
    %c0_i32_0 = arith.constant 0 : i32
    return %arg0, %c0_i32 : i32, i32
  }
  func.func @transform_6(%arg0: i32, %arg1: i32) -> (i32, i32) {
    %c0_i32 = arith.constant 0 : i32
    %c0_i32_0 = arith.constant 0 : i32
    return %arg0, %c0_i32 : i32, i32
  }
}

module attributes {stable_mosaic.version = 11 : i64} {
  func.func @_bn_relu_kernel(%arg0: i32, %arg1: memref<128x128xbf16, #tpu.memory_space<vmem>>, %arg2: memref<1x128xf32, #tpu.memory_space<vmem>>, %arg3: memref<1x128xf32, #tpu.memory_space<vmem>>, %arg4: memref<128x128xf32, #tpu.memory_space<vmem>>) attributes {dimension_semantics = [#tpu.dimension_semantics<parallel>], iteration_bounds = array<i64: 1>, scalar_prefetch = 0 : i64, scratch_operands = 0 : i64, tpu.core_type = #tpu.core_type<tc>, window_params = [{transform_indices = @transform_0, window_bounds = array<i64: 128, 128>}, {pipeline_mode = #tpu.pipeline_mode<synchronous>, transform_indices = @transform_1, window_bounds = array<i64: 1, 128>}, {pipeline_mode = #tpu.pipeline_mode<synchronous>, transform_indices = @transform_2, window_bounds = array<i64: 1, 128>}, {transform_indices = @transform_3, window_bounds = array<i64: 128, 128>}]} {
    %c0 = arith.constant 0 : index
    %c0_0 = arith.constant 0 : index
    %0 = vector.load %arg1[%c0, %c0_0] : memref<128x128xbf16, #tpu.memory_space<vmem>>, vector<128x128xbf16>
    %1 = arith.extf %0 : vector<128x128xbf16> to vector<128x128xf32>
    %c0_1 = arith.constant 0 : index
    %c0_2 = arith.constant 0 : index
    %2 = vector.load %arg2[%c0_1, %c0_2] : memref<1x128xf32, #tpu.memory_space<vmem>>, vector<1x128xf32>
    %3 = vector.broadcast %2 : vector<1x128xf32> to vector<128x128xf32>
    %4 = arith.mulf %1, %3 : vector<128x128xf32>
    %c0_3 = arith.constant 0 : index
    %c0_4 = arith.constant 0 : index
    %5 = vector.load %arg3[%c0_3, %c0_4] : memref<1x128xf32, #tpu.memory_space<vmem>>, vector<1x128xf32>
    %6 = vector.broadcast %5 : vector<1x128xf32> to vector<128x128xf32>
    %7 = arith.addf %4, %6 : vector<128x128xf32>
    %cst = arith.constant 0.000000e+00 : f32
    %8 = vector.broadcast %cst : f32 to vector<128x128xf32>
    %9 = arith.maximumf %7, %8 : vector<128x128xf32>
    %c0_5 = arith.constant 0 : index
    %c0_6 = arith.constant 0 : index
    %10 = vector.load %arg4[%c0_5, %c0_6] : memref<128x128xf32, #tpu.memory_space<vmem>>, vector<128x128xf32>
    tpu.vector_store %arg4[%c0_5, %c0_6], %9 {strides = array<i32>} : memref<128x128xf32, #tpu.memory_space<vmem>>, vector<128x128xf32>,
    return
  }
  func.func @transform_0(%arg0: i32) -> (i32, i32) {
    %c0_i32 = arith.constant 0 : i32
    %c0_i32_0 = arith.constant 0 : i32
    return %arg0, %c0_i32 : i32, i32
  }
  func.func @transform_1(%arg0: i32) -> (i32, i32) {
    %c0_i32 = arith.constant 0 : i32
    %c0_i32_0 = arith.constant 0 : i32
    %c0_i32_1 = arith.constant 0 : i32
    return %c0_i32, %c0_i32_0 : i32, i32
  }
  func.func @transform_2(%arg0: i32) -> (i32, i32) {
    %c0_i32 = arith.constant 0 : i32
    %c0_i32_0 = arith.constant 0 : i32
    %c0_i32_1 = arith.constant 0 : i32
    return %c0_i32, %c0_i32_0 : i32, i32
  }
  func.func @transform_3(%arg0: i32) -> (i32, i32) {
    %c0_i32 = arith.constant 0 : i32
    %c0_i32_0 = arith.constant 0 : i32
    return %arg0, %c0_i32 : i32, i32
  }
}

</mosaic_0001>

<llo_original>
// kernel: tile.10
$region0: #{tile.10}
  #allocation0 [shape = 's32[1]{0}', space=sflag, size = 0x4, scoped, tag = 'scoped memory for tile.10']
  %s0 = inlined_call_operand.vmem [shape: f32[4], index: 0, kind: input, shape index: {}]
  %s1 = inlined_call_operand.vmem [shape: f32[9,4], index: 1, kind: output, shape index: {}]
  // Predicated region
  $region2: #{tile.10} parent=0 // pred_check
    _
  $region3: #{tile.10} parent=0 // pred_check_branch
    %3 = sbr.rel (0) target = $region5
  $region4: #{tile.10} parent=0 // pred_region
    _
  $region5: #{tile.10} parent=0 // pred_fallthru
    _
  %v4 = vld [vmem:[%s0] ss:$0 sm:$0xff]
  %5 = vst [vmem:[%s1] sm:$0xff] %v4
  %s6 = scalar_lea.vmem %s1, 8
  %7 = vst [vmem:[%s6] sm:$0xff] %v4

// kernel: tile.11
$region0: #{tile.11}
  %s0 = inlined_call_operand.vmem [shape: f32[9,4], index: 0, kind: input, shape index: {}]
  %s1 = inlined_call_operand.vmem [shape: f32[36], index: 1, kind: output, shape index: {}]
  $region1: #{tile.11} parent=0
    #allocation0 [shape = 'u8[4096]{0}', space=vmem, size = 0x1000, scoped, tag = 'scoped mem for output reshape']
    %v2 = vld [vmem:[%s0] sm:$0x1]
    %vm3 = vcmask 31744
    %4 = vst.msk [vmem:[#allocation0] sm:$0x1] %vm3, %v2
    %s5 = scalar_lea.vmem %s0, 8
    %v6 = vld [vmem:[%s5] sm:$0x1]
    %7 = vrot.lane.b32.xlu0 %v6, 32
    %v8 = vpop.permute.xlu0 %7
    %vm9 = vcmask 294144
    %10 = vst.msk [vmem:[#allocation0] sm:$0x1] %vm9, %v8
    %s11 = scalar_lea.vmem %s0, 7
    %v12 = vld [vmem:[%s11] sm:$0x1]
    %13 = vrot.lane.b32.xlu0 %v12, 28
    %v14 = vpop.permute.xlu0 %13
    %vm15 = vcmask 261344
    %16 = vst.msk [vmem:[#allocation0] sm:$0x1] %vm15, %v14
    %s17 = scalar_lea.vmem %s0, 6
    %v18 = vld [vmem:[%s17] sm:$0x1]
    %19 = vrot.lane.b32.xlu0 %v18, 24
    %v20 = vpop.permute.xlu0 %19
    %vm21 = vcmask 228544
    %22 = vst.msk [vmem:[#allocation0] sm:$0x1] %vm21, %v20
    %s23 = scalar_lea.vmem %s0, 5
    %v24 = vld [vmem:[%s23] sm:$0x1]
    %25 = vrot.lane.b32.xlu0 %v24, 20
    %v26 = vpop.permute.xlu0 %25
    %vm27 = vcmask 195744
    %28 = vst.msk [vmem:[#allocation0] sm:$0x1] %vm27, %v26
    %s29 = scalar_lea.vmem %s0, 4
    %v30 = vld [vmem:[%s29] sm:$0x1]
    %31 = vrot.lane.b32.xlu0 %v30, 16
    %v32 = vpop.permute.xlu0 %31
    %vm33 = vcmask 162944
    %34 = vst.msk [vmem:[#allocation0] sm:$0x1] %vm33, %v32
    %s35 = scalar_lea.vmem %s0, 3
    %v36 = vld [vmem:[%s35] sm:$0x1]
    %37 = vrot.lane.b32.xlu0 %v36, 12
    %v38 = vpop.permute.xlu0 %37
    %vm39 = vcmask 130144
    %40 = vst.msk [vmem:[#allocation0] sm:$0x1] %vm39, %v38
    %s41 = scalar_lea.vmem %s0, 2
    %v42 = vld [vmem:[%s41] sm:$0x1]
    %43 = vrot.lane.b32.xlu0 %v42, 8
    %v44 = vpop.permute.xlu0 %43
    %vm45 = vcmask 97344
    %46 = vst.msk [vmem:[#allocation0] sm:$0x1] %vm45, %v44
    %s47 = scalar_lea.vmem %s0, 1
    %v48 = vld [vmem:[%s47] sm:$0x1]
    %49 = vrot.lane.b32.xlu0 %v48, 4
    %v50 = vpop.permute.xlu0 %49
    %vm51 = vcmask 64544
    %52 = vst.msk [vmem:[#allocation0] sm:$0x1] %vm51, %v50
    %s54 = sshllo.u32 0, 1
    %v56 = vld [vmem:[#allocation0] sm:%s54]
    %s57 = sshllo.u32 0, 1
    %58 = vst [vmem:[%s1] sm:%s57] %v56

// kernel: _lambda_.4
$region0: #{_lambda_.4}
  #allocation0 [shape = 'u32[]', space=smem, size = 0x4, offset = 0x4, fixed_abs, tag = 'smem constant byte address 0x4 - core index']
  #allocation1 [shape = 'u32[144,128]{1,0:T(1,128)}', space=vmem, size = 0x12000, scoped, tag = 'internal scratch']
  %s0 = inlined_call_operand.vmem [shape: bf16[128,40], index: 0, kind: input, shape index: {}]
  %s1 = inlined_call_operand.vmem [shape: bf16[40,128], index: 1, kind: input, shape index: {}]
  %s2 = inlined_call_operand.vmem [shape: f32[1,40], index: 2, kind: input, shape index: {}]
  %s3 = inlined_call_operand.vmem [shape: f32[1,40], index: 3, kind: input, shape index: {}]
  %s4 = inlined_call_operand.vmem [shape: bf16[128,128], index: 4, kind: output, shape index: {0}]
  %s5 = inlined_call_operand.vmem [shape: f32[8,128], index: 5, kind: output, shape index: {1}]
  %s6 = inlined_call_operand.vmem [shape: f32[8,128], index: 6, kind: output, shape index: {2}]
  %7 = xla_tuple %s4, %s5, %s6
  %s8 = sld [smem:[#allocation0]]
  $region46: #{_lambda_.4} parent=0
    _
  %s10 = ssub.s32 1, %s8
  %s11 = scalar_select 0, %s10, %s8
  // Predicated region
  $region2: #{_lambda_.4} parent=0 // pred_check
    _
  $region3: #{_lambda_.4} parent=0 // pred_check_branch
    %13 = sbr.rel (0) target = $region5
  $region4: #{_lambda_.4} parent=0 // pred_region
    %s14 = sadd.s32 0, 0
    %s15 = smul.u32 16, %s14
    %p16 = scmp.lt.s32.totalorder %s15, 15
    %s17 = scalar_select %p16, %s15, 15
    %s18 = smul.addr %s17, 4
    %s19 = scalar_lea.vmem %s0, %s18
    %s20 = sadd.s32 0, 0
    %s21 = smul.u32 16, %s20
  $region5: #{_lambda_.4} parent=0 // pred_fallthru
    _
  // Predicated region
  $region6: #{_lambda_.4} parent=0 // pred_check
    _
  $region7: #{_lambda_.4} parent=0 // pred_check_branch
    %23 = sbr.rel (0) target = $region9
  $region8: #{_lambda_.4} parent=0 // pred_region
    _
  $region9: #{_lambda_.4} parent=0 // pred_fallthru
    _
  // Predicated region
  $region10: #{_lambda_.4} parent=0 // pred_check
    _
  $region11: #{_lambda_.4} parent=0 // pred_check_branch
    %25 = sbr.rel (0) target = $region13
  $region12: #{_lambda_.4} parent=0 // pred_region
    _
  $region13: #{_lambda_.4} parent=0 // pred_fallthru
    _
  // Predicated region
  $region14: #{_lambda_.4} parent=0 // pred_check
    _
  $region15: #{_lambda_.4} parent=0 // pred_check_branch
    %27 = sbr.rel (0) target = $region17
  $region16: #{_lambda_.4} parent=0 // pred_region
    _
  $region17: #{_lambda_.4} parent=0 // pred_fallthru
    _
  %s28 = sadd.s32 0, 0
  %s29 = smul.u32 16, %s28
  %p30 = scmp.lt.s32.totalorder %s29, 15
  %s31 = scalar_select %p30, %s29, 15
  %s32 = smul.addr %s31, 4
  %s33 = scalar_lea.vmem %s0, %s32
  %s34 = sadd.s32 0, 0
  %s35 = smul.u32 16, %s34
  %p36 = scmp.lt.s32.totalorder %s35, 15
  %s37 = scalar_select %p36, %s35, 15
  %s38 = smul.addr %s37, 4
  %s39 = scalar_lea.vmem %s4, %s38
  %s40 = sadd.s32 0, 0
  %s41 = smul.u32 16, %s40
  %p42 = scmp.lt.s32.totalorder %s41, 15
  %s43 = scalar_select %p42, %s41, 15
  %s44 = smul.addr %s43, 4
  %s45 = scalar_lea.vmem %s0, %s44
  %s46 = sadd.s32 0, 0
  %s47 = smul.u32 16, %s46
  %s48 = sadd.s32 0, 0
  %s49 = smul.u32 16, %s48
  %p50 = scmp.lt.s32.totalorder %s49, 15
  %s51 = scalar_select %p50, %s49, 15
  %s52 = smul.addr %s51, 4
  %s53 = scalar_lea.vmem %s4, %s52
  %s54 = sadd.s32 0, 0
  %s55 = smul.u32 16, %s54
  %v57 = vld [vmem:[%s45] sm:$0xf]
  %v58 = vld [vmem:[%s45 + $0x4] sm:$0xf]
  %v59 = vld [vmem:[%s45 + $0x8] sm:$0xf]
  %v60 = vld [vmem:[%s45 + $0xc] sm:$0xf]
  %v61 = vld [vmem:[%s45 + $0x10] sm:$0xf]
  %v62 = vld [vmem:[%s45 + $0x14] sm:$0xf]
  %v63 = vld [vmem:[%s45 + $0x18] sm:$0xf]
  %v64 = vld [vmem:[%s45 + $0x1c] sm:$0xf]
  %v65 = vld [vmem:[%s45 + $0x20] sm:$0xf]
  %v66 = vld [vmem:[%s45 + $0x24] sm:$0xf]
  %v67 = vld [vmem:[%s45 + $0x28] sm:$0xf]
  %v68 = vld [vmem:[%s45 + $0x2c] sm:$0xf]
  %v69 = vld [vmem:[%s45 + $0x30] sm:$0xf]
  %v70 = vld [vmem:[%s45 + $0x34] sm:$0xf]
  %v71 = vld [vmem:[%s45 + $0x38] sm:$0xf]
  %v72 = vld [vmem:[%s45 + $0x3c] sm:$0xf]
  %v73 = vunpack.c.l.bf16 %v57
  %v74 = vunpack.c.l.bf16 %v58
  %v75 = vunpack.c.l.bf16 %v59
  %v76 = vunpack.c.l.bf16 %v60
  %v77 = vunpack.c.l.bf16 %v61
  %v78 = vunpack.c.l.bf16 %v62
  %v79 = vunpack.c.l.bf16 %v63
  %v80 = vunpack.c.l.bf16 %v64
  %v81 = vunpack.c.l.bf16 %v65
  %v82 = vunpack.c.l.bf16 %v66
  %v83 = vunpack.c.l.bf16 %v67
  %v84 = vunpack.c.l.bf16 %v68
  %v85 = vunpack.c.l.bf16 %v69
  %v86 = vunpack.c.l.bf16 %v70
  %v87 = vunpack.c.l.bf16 %v71
  %v88 = vunpack.c.l.bf16 %v72
  %v89 = vld [vmem:[%s2] sm:$0x1]
  %v91 = vlaneseq
  %v92 = vshrl.u32 %v91, 7
  %v93 = vsub.s32 0, %v92
  %v94 = vrot.slane %v89, %v93
  %v96 = vmul.f32 %v73, %v94
  %v97 = vmul.f32 %v74, %v94
  %v98 = vmul.f32 %v75, %v94
  %v99 = vmul.f32 %v76, %v94
  %v100 = vmul.f32 %v77, %v94
  %v101 = vmul.f32 %v78, %v94
  %v102 = vmul.f32 %v79, %v94
  %v103 = vmul.f32 %v80, %v94
  %v104 = vmul.f32 %v81, %v94
  %v105 = vmul.f32 %v82, %v94
  %v106 = vmul.f32 %v83, %v94
  %v107 = vmul.f32 %v84, %v94
  %v108 = vmul.f32 %v85, %v94
  %v109 = vmul.f32 %v86, %v94
  %v110 = vmul.f32 %v87, %v94
  %v111 = vmul.f32 %v88, %v94
  %v112 = vld [vmem:[%s3] sm:$0x1]
  %v114 = vlaneseq
  %v115 = vshrl.u32 %v114, 7
  %v116 = vsub.s32 0, %v115
  %v117 = vrot.slane %v112, %v116
  %v119 = vadd.f32 %v96, %v117
  %v120 = vadd.f32 %v97, %v117
  %v121 = vadd.f32 %v98, %v117
  %v122 = vadd.f32 %v99, %v117
  %v123 = vadd.f32 %v100, %v117
  %v124 = vadd.f32 %v101, %v117
  %v125 = vadd.f32 %v102, %v117
  %v126 = vadd.f32 %v103, %v117
  %v127 = vadd.f32 %v104, %v117
  %v128 = vadd.f32 %v105, %v117
  %v129 = vadd.f32 %v106, %v117
  %v130 = vadd.f32 %v107, %v117
  %v131 = vadd.f32 %v108, %v117
  %v132 = vadd.f32 %v109, %v117
  %v133 = vadd.f32 %v110, %v117
  %v134 = vadd.f32 %v111, %v117
  %v135 = vmax.f32 %v119, 0.0
  %v136 = vmax.f32 %v120, 0.0
  %v137 = vmax.f32 %v121, 0.0
  %v138 = vmax.f32 %v122, 0.0
  %v139 = vmax.f32 %v123, 0.0
  %v140 = vmax.f32 %v124, 0.0
  %v141 = vmax.f32 %v125, 0.0
  %v142 = vmax.f32 %v126, 0.0
  %v143 = vmax.f32 %v127, 0.0
  %v144 = vmax.f32 %v128, 0.0
  %v145 = vmax.f32 %v129, 0.0
  %v146 = vmax.f32 %v130, 0.0
  %v147 = vmax.f32 %v131, 0.0
  %v148 = vmax.f32 %v132, 0.0
  %v149 = vmax.f32 %v133, 0.0
  %v150 = vmax.f32 %v134, 0.0
  %v151 = vpack.c.bf16 %v136, %v135
  %v152 = vpack.c.bf16 %v138, %v137
  %v153 = vpack.c.bf16 %v140, %v139
  %v154 = vpack.c.bf16 %v142, %v141
  %v155 = vpack.c.bf16 %v144, %v143
  %v156 = vpack.c.bf16 %v146, %v145
  %v157 = vpack.c.bf16 %v148, %v147
  %v158 = vpack.c.bf16 %v150, %v149
  %v159 = vld [vmem:[%s1] sm:$0xf]
  %v160 = vld [vmem:[%s1 + $0x4] sm:$0xf]
  %v161 = vld [vmem:[%s1 + $0x8] sm:$0xf]
  %v162 = vld [vmem:[%s1 + $0xc] sm:$0xf]
  %v163 = vld [vmem:[%s1 + $0x10] sm:$0xf]
  %v169 = vunpack.c.l.b16 %v159
  %v170 = vunpack.c.l.b16 %v160
  %v171 = vunpack.c.l.b16 %v161
  %v172 = vunpack.c.l.b16 %v162
  %v173 = vunpack.c.l.b16 %v163
  %v174 = vpack.c.b16 %v170, %v169
  %v175 = vpack.c.b16 %v172, %v171
  %v176 = vpack.c.b16 %v173, %v173
  %vm179 = vcmask 326656
  %v181 = vsel %vm179, %v151, 0
  %v184 = vsel %vm179, %v152, 0
  %v187 = vsel %vm179, %v153, 0
  %v190 = vsel %vm179, %v154, 0
  %v193 = vsel %vm179, %v155, 0
  %v196 = vsel %vm179, %v156, 0
  %v199 = vsel %vm179, %v157, 0
  %v202 = vsel %vm179, %v158, 0
  %vm204 = vcmask 1043456
  %v206 = vsel %vm204, %v176, 0
  %208 = vmatprep.subr.bf16.mxu0 0
  %209 = vmatpush1.bf16.msra.mxu0 %v174
  %210 = vmatprep.subr.bf16.mxu0 0
  %211 = vmatpush1.bf16.msra.mxu0 %v175
  %212 = vmatprep.subr.bf16.mxu0 0
  %213 = vmatpush1.bf16.msra.mxu0 %v206
  %214 = vmatprep.subr.bf16.mxu0 0
  %215 = vmatpush1.bf16.msra.mxu0 0
  %216 = vmatprep.subr.bf16.mxu0 0
  %217 = vmatpush1.bf16.msra.mxu0 0
  %218 = vmatprep.subr.bf16.mxu0 0
  %219 = vmatpush1.bf16.msra.mxu0 0
  %220 = vmatprep.subr.bf16.mxu0 0
  %221 = vmatpush1.bf16.msra.mxu0 0
  %222 = vmatprep.subr.bf16.mxu0 0
  %223 = vmatpush1.bf16.msra.mxu0 0
  %224 = vmatprep.subr.bf16.mxu0 0
  %225 = vmatpush1.bf16.msra.mxu0 0
  %226 = vmatprep.subr.bf16.mxu0 0
  %227 = vmatpush1.bf16.msra.mxu0 0
  %228 = vmatprep.subr.bf16.mxu0 0
  %229 = vmatpush1.bf16.msra.mxu0 0
  %230 = vmatprep.subr.bf16.mxu0 0
  %231 = vmatpush1.bf16.msra.mxu0 0
  %232 = vmatprep.subr.bf16.mxu0 0
  %233 = vmatpush1.bf16.msra.mxu0 0
  %234 = vmatprep.subr.bf16.mxu0 0
  %235 = vmatpush1.bf16.msra.mxu0 0
  %236 = vmatprep.subr.bf16.mxu0 0
  %237 = vmatpush1.bf16.msra.mxu0 0
  %238 = vmatprep.subr.bf16.mxu0 0
  %239 = vmatpush1.bf16.msra.mxu0 0
  %240 = vmatprep.mubr.bf16.mxu0 0
  %241 = vmatmul.mubr.bf16.gmra.mrb[0].mxu0 %v181
  %v242 = vpop.f32.mrb[0].mxu0
  %v243 = vadd.f32 0.0, %v242
  %v244 = vpop.f32.mrb[0].mxu0
  %v245 = vpop.f32.mrb[0].mxu0
  %v246 = vadd.f32 0.0, %v245
  %v247 = vpop.f32.mrb[0].mxu0
  %248 = vmatprep.mubr.bf16.mxu0 0
  %249 = vmatmul.mubr.bf16.gmra.mrb[0].mxu0 %v184
  %v250 = vpop.f32.mrb[0].mxu0
  %v251 = vadd.f32 0.0, %v250
  %v252 = vpop.f32.mrb[0].mxu0
  %v253 = vpop.f32.mrb[0].mxu0
  %v254 = vadd.f32 0.0, %v253
  %v255 = vpop.f32.mrb[0].mxu0
  %256 = vmatprep.mubr.bf16.mxu0 0
  %257 = vmatmul.mubr.bf16.gmra.mrb[0].mxu0 %v187
  %v258 = vpop.f32.mrb[0].mxu0
  %v259 = vadd.f32 0.0, %v258
  %v260 = vpop.f32.mrb[0].mxu0
  %v261 = vpop.f32.mrb[0].mxu0
  %v262 = vadd.f32 0.0, %v261
  %v263 = vpop.f32.mrb[0].mxu0
  %264 = vmatprep.mubr.bf16.mxu0 0
  %265 = vmatmul.mubr.bf16.gmra.mrb[0].mxu0 %v190
  %v266 = vpop.f32.mrb[0].mxu0
  %v267 = vadd.f32 0.0, %v266
  %v268 = vpop.f32.mrb[0].mxu0
  %v269 = vpop.f32.mrb[0].mxu0
  %v270 = vadd.f32 0.0, %v269
  %v271 = vpop.f32.mrb[0].mxu0
  %272 = vmatprep.mubr.bf16.mxu0 0
  %273 = vmatmul.mubr.bf16.gmra.mrb[0].mxu0 %v193
  %v274 = vpop.f32.mrb[0].mxu0
  %v275 = vadd.f32 0.0, %v274
  %v276 = vpop.f32.mrb[0].mxu0
  %v277 = vpop.f32.mrb[0].mxu0
  %v278 = vadd.f32 0.0, %v277
  %v279 = vpop.f32.mrb[0].mxu0
  %280 = vmatprep.mubr.bf16.mxu0 0
  %281 = vmatmul.mubr.bf16.gmra.mrb[0].mxu0 %v196
  %v282 = vpop.f32.mrb[0].mxu0
  %v283 = vadd.f32 0.0, %v282
  %v284 = vpop.f32.mrb[0].mxu0
  %v285 = vpop.f32.mrb[0].mxu0
  %v286 = vadd.f32 0.0, %v285
  %v287 = vpop.f32.mrb[0].mxu0
  %288 = vmatprep.mubr.bf16.mxu0 0
  %289 = vmatmul.mubr.bf16.gmra.mrb[0].mxu0 %v199
  %v290 = vpop.f32.mrb[0].mxu0
  %v291 = vadd.f32 0.0, %v290
  %v292 = vpop.f32.mrb[0].mxu0
  %v293 = vpop.f32.mrb[0].mxu0
  %v294 = vadd.f32 0.0, %v293
  %v295 = vpop.f32.mrb[0].mxu0
  %296 = vmatprep.mubr.bf16.mxu0 0
  %297 = vmatmul.mubr.bf16.gmra.mrb[0].mxu0 %v202
  %v298 = vpop.f32.mrb[0].mxu0
  %v299 = vadd.f32 0.0, %v298
  %v300 = vpop.f32.mrb[0].mxu0
  %v301 = vpop.f32.mrb[0].mxu0
  %v302 = vadd.f32 0.0, %v301
  %v303 = vpop.f32.mrb[0].mxu0
  %304 = vdwg.mxu0
  %v305 = vpack.c.bf16 %v246, %v243
  %v306 = vpack.c.bf16 %v254, %v251
  %v307 = vpack.c.bf16 %v262, %v259
  %v308 = vpack.c.bf16 %v270, %v267
  %v309 = vpack.c.bf16 %v278, %v275
  %v310 = vpack.c.bf16 %v286, %v283
  %v311 = vpack.c.bf16 %v294, %v291
  %v312 = vpack.c.bf16 %v302, %v299
  %v321 = vunpack.c.l.b16 %v305
  %v322 = vunpack.c.h.b16 %v305
  %v323 = vunpack.c.l.b16 %v306
  %v324 = vunpack.c.h.b16 %v306
  %v325 = vunpack.c.l.b16 %v307
  %v326 = vunpack.c.h.b16 %v307
  %v327 = vunpack.c.l.b16 %v308
  %v328 = vunpack.c.h.b16 %v308
  %v329 = vunpack.c.l.b16 %v309
  %v330 = vunpack.c.h.b16 %v309
  %v331 = vunpack.c.l.b16 %v310
  %v332 = vunpack.c.h.b16 %v310
  %v333 = vunpack.c.l.b16 %v311
  %v334 = vunpack.c.h.b16 %v311
  %v335 = vunpack.c.l.b16 %v312
  %v336 = vunpack.c.h.b16 %v312
  %v337 = vpack.c.b16 %v321, %v321
  %v338 = vpack.c.b16 %v322, %v322
  %v339 = vpack.c.b16 %v323, %v323
  %v340 = vpack.c.b16 %v324, %v324
  %v341 = vpack.c.b16 %v325, %v325
  %v342 = vpack.c.b16 %v326, %v326
  %v343 = vpack.c.b16 %v327, %v327
  %v344 = vpack.c.b16 %v328, %v328
  %v345 = vpack.c.b16 %v329, %v329
  %v346 = vpack.c.b16 %v330, %v330
  %v347 = vpack.c.b16 %v331, %v331
  %v348 = vpack.c.b16 %v332, %v332
  %v349 = vpack.c.b16 %v333, %v333
  %v350 = vpack.c.b16 %v334, %v334
  %v351 = vpack.c.b16 %v335, %v335
  %v352 = vpack.c.b16 %v336, %v336
  %369 = vst [vmem:[%s53] sm:$0xf] %v337
  %370 = vst [vmem:[%s53 + $0x4] sm:$0xf] %v338
  %371 = vst [vmem:[%s53 + $0x8] sm:$0xf] %v339
  %372 = vst [vmem:[%s53 + $0xc] sm:$0xf] %v340
  %373 = vst [vmem:[%s53 + $0x10] sm:$0xf] %v341
  %374 = vst [vmem:[%s53 + $0x14] sm:$0xf] %v342
  %375 = vst [vmem:[%s53 + $0x18] sm:$0xf] %v343
  %376 = vst [vmem:[%s53 + $0x1c] sm:$0xf] %v344
  %377 = vst [vmem:[%s53 + $0x20] sm:$0xf] %v345
  %378 = vst [vmem:[%s53 + $0x24] sm:$0xf] %v346
  %379 = vst [vmem:[%s53 + $0x28] sm:$0xf] %v347
  %380 = vst [vmem:[%s53 + $0x2c] sm:$0xf] %v348
  %381 = vst [vmem:[%s53 + $0x30] sm:$0xf] %v349
  %382 = vst [vmem:[%s53 + $0x34] sm:$0xf] %v350
  %383 = vst [vmem:[%s53 + $0x38] sm:$0xf] %v351
  %384 = vst [vmem:[%s53 + $0x3c] sm:$0xf] %v352
  %p385 = scmp.eq.s32.totalorder 0, 0
  // Predicated region
  $region18: #{_lambda_.4} parent=0 // pred_check
    %p386 = pneg %p385
  $region19: #{_lambda_.4} parent=0 // pred_check_branch
    %388 = sbr.rel (%p386) target = $region21
  $region20: #{_lambda_.4} parent=0 // pred_region
    %389 = vst [vmem:[%s5] sm:$0xff] 0.0
    %390 = vst [vmem:[%s6] sm:$0xff] 0.0
  $region21: #{_lambda_.4} parent=0 // pred_fallthru
    _
  %s391 = sadd.s32 0, 0
  %s392 = smul.u32 %s391, 128
  %v393 = vlaneseq
  %v394 = vshrl.u32 %v393, 7
  %v395 = vadd.s32 %v394, 8
  %v396 = vadd.s32 %v394, 16
  %v397 = vadd.s32 %v394, 24
  %v398 = vadd.s32 %v394, 32
  %v399 = vadd.s32 %v394, 40
  %v400 = vadd.s32 %v394, 48
  %v401 = vadd.s32 %v394, 56
  %v402 = vadd.s32 %v394, 64
  %v403 = vadd.s32 %v394, 72
  %v404 = vadd.s32 %v394, 80
  %v405 = vadd.s32 %v394, 88
  %v406 = vadd.s32 %v394, 96
  %v407 = vadd.s32 %v394, 104
  %v408 = vadd.s32 %v394, 112
  %v409 = vadd.s32 %v394, 120
  %v410 = vstv %s392
  %v411 = vadd.s32 %v410, %v394
  %v412 = vadd.s32 %v410, %v395
  %v413 = vadd.s32 %v410, %v396
  %v414 = vadd.s32 %v410, %v397
  %v415 = vadd.s32 %v410, %v398
  %v416 = vadd.s32 %v410, %v399
  %v417 = vadd.s32 %v410, %v400
  %v418 = vadd.s32 %v410, %v401
  %v419 = vadd.s32 %v410, %v402
  %v420 = vadd.s32 %v410, %v403
  %v421 = vadd.s32 %v410, %v404
  %v422 = vadd.s32 %v410, %v405
  %v423 = vadd.s32 %v410, %v406
  %v424 = vadd.s32 %v410, %v407
  %v425 = vadd.s32 %v410, %v408
  %v426 = vadd.s32 %v410, %v409
  %vm427 = vcmp.lt.s32.totalorder %v411, 128
  %vm428 = vcmp.lt.s32.totalorder %v412, 128
  %vm429 = vcmp.lt.s32.totalorder %v413, 128
  %vm430 = vcmp.lt.s32.totalorder %v414, 128
  %vm431 = vcmp.lt.s32.totalorder %v415, 128
  %vm432 = vcmp.lt.s32.totalorder %v416, 128
  %vm433 = vcmp.lt.s32.totalorder %v417, 128
  %vm434 = vcmp.lt.s32.totalorder %v418, 128
  %vm435 = vcmp.lt.s32.totalorder %v419, 128
  %vm436 = vcmp.lt.s32.totalorder %v420, 128
  %vm437 = vcmp.lt.s32.totalorder %v421, 128
  %vm438 = vcmp.lt.s32.totalorder %v422, 128
  %vm439 = vcmp.lt.s32.totalorder %v423, 128
  %vm440 = vcmp.lt.s32.totalorder %v424, 128
  %vm441 = vcmp.lt.s32.totalorder %v425, 128
  %vm442 = vcmp.lt.s32.totalorder %v426, 128
  %v443 = vsel %vm427, 1, 0
  %v444 = vsel %vm428, 1, 0
  %v445 = vsel %vm429, 1, 0
  %v446 = vsel %vm430, 1, 0
  %v447 = vsel %vm431, 1, 0
  %v448 = vsel %vm432, 1, 0
  %v449 = vsel %vm433, 1, 0
  %v450 = vsel %vm434, 1, 0
  %v451 = vsel %vm435, 1, 0
  %v452 = vsel %vm436, 1, 0
  %v453 = vsel %vm437, 1, 0
  %v454 = vsel %vm438, 1, 0
  %v455 = vsel %vm439, 1, 0
  %v456 = vsel %vm440, 1, 0
  %v457 = vsel %vm441, 1, 0
  %v458 = vsel %vm442, 1, 0
  %vm459 = vcmp.eq.s32.totalorder %v443, 1
  %vm460 = vcmp.eq.s32.totalorder %v444, 1
  %vm461 = vcmp.eq.s32.totalorder %v445, 1
  %vm462 = vcmp.eq.s32.totalorder %v446, 1
  %vm463 = vcmp.eq.s32.totalorder %v447, 1
  %vm464 = vcmp.eq.s32.totalorder %v448, 1
  %vm465 = vcmp.eq.s32.totalorder %v449, 1
  %vm466 = vcmp.eq.s32.totalorder %v450, 1
  %vm467 = vcmp.eq.s32.totalorder %v451, 1
  %vm468 = vcmp.eq.s32.totalorder %v452, 1
  %vm469 = vcmp.eq.s32.totalorder %v453, 1
  %vm470 = vcmp.eq.s32.totalorder %v454, 1
  %vm471 = vcmp.eq.s32.totalorder %v455, 1
  %vm472 = vcmp.eq.s32.totalorder %v456, 1
  %vm473 = vcmp.eq.s32.totalorder %v457, 1
  %vm474 = vcmp.eq.s32.totalorder %v458, 1
  %v475 = vsel %vm459, %v243, 0.0
  %v476 = vsel %vm460, %v246, 0.0
  %v477 = vsel %vm461, %v251, 0.0
  %v478 = vsel %vm462, %v254, 0.0
  %v479 = vsel %vm463, %v259, 0.0
  %v480 = vsel %vm464, %v262, 0.0
  %v481 = vsel %vm465, %v267, 0.0
  %v482 = vsel %vm466, %v270, 0.0
  %v483 = vsel %vm467, %v275, 0.0
  %v484 = vsel %vm468, %v278, 0.0
  %v485 = vsel %vm469, %v283, 0.0
  %v486 = vsel %vm470, %v286, 0.0
  %v487 = vsel %vm471, %v291, 0.0
  %v488 = vsel %vm472, %v294, 0.0
  %v489 = vsel %vm473, %v299, 0.0
  %v490 = vsel %vm474, %v302, 0.0
  %v491 = vadd.f32 %v475, %v476
  %v492 = vadd.f32 %v491, %v477
  %v493 = vadd.f32 %v492, %v478
  %v494 = vadd.f32 %v493, %v479
  %v495 = vadd.f32 %v494, %v480
  %v496 = vadd.f32 %v495, %v481
  %v497 = vadd.f32 %v496, %v482
  %v498 = vadd.f32 %v497, %v483
  %v499 = vadd.f32 %v498, %v484
  %v500 = vadd.f32 %v499, %v485
  %v501 = vadd.f32 %v500, %v486
  %v502 = vadd.f32 %v501, %v487
  %v503 = vadd.f32 %v502, %v488
  %v504 = vadd.f32 %v503, %v489
  %v505 = vadd.f32 %v504, %v490
  %v506 = vrot.slane %v505, 4
  %v507 = vadd.f32 %v505, %v506
  %v508 = vrot.slane %v507, 2
  %v509 = vadd.f32 %v507, %v508
  %v510 = vrot.slane %v509, 1
  %v511 = vadd.f32 %v509, %v510
  %v512 = vmul.f32 %v475, %v475
  %v513 = vmul.f32 %v476, %v476
  %v514 = vmul.f32 %v477, %v477
  %v515 = vmul.f32 %v478, %v478
  %v516 = vmul.f32 %v479, %v479
  %v517 = vmul.f32 %v480, %v480
  %v518 = vmul.f32 %v481, %v481
  %v519 = vmul.f32 %v482, %v482
  %v520 = vmul.f32 %v483, %v483
  %v521 = vmul.f32 %v484, %v484
  %v522 = vmul.f32 %v485, %v485
  %v523 = vmul.f32 %v486, %v486
  %v524 = vmul.f32 %v487, %v487
  %v525 = vmul.f32 %v488, %v488
  %v526 = vmul.f32 %v489, %v489
  %v527 = vmul.f32 %v490, %v490
  %v528 = vadd.f32 %v512, %v513
  %v529 = vadd.f32 %v528, %v514
  %v530 = vadd.f32 %v529, %v515
  %v531 = vadd.f32 %v530, %v516
  %v532 = vadd.f32 %v531, %v517
  %v533 = vadd.f32 %v532, %v518
  %v534 = vadd.f32 %v533, %v519
  %v535 = vadd.f32 %v534, %v520
  %v536 = vadd.f32 %v535, %v521
  %v537 = vadd.f32 %v536, %v522
  %v538 = vadd.f32 %v537, %v523
  %v539 = vadd.f32 %v538, %v524
  %v540 = vadd.f32 %v539, %v525
  %v541 = vadd.f32 %v540, %v526
  %v542 = vadd.f32 %v541, %v527
  %v543 = vrot.slane %v542, 4
  %v544 = vadd.f32 %v542, %v543
  %v545 = vrot.slane %v544, 2
  %v546 = vadd.f32 %v544, %v545
  %v547 = vrot.slane %v546, 1
  %v548 = vadd.f32 %v546, %v547
  %v549 = vld [vmem:[%s5] sm:$0xff]
  %v550 = vadd.f32 %v549, %v511
  %551 = vst [vmem:[%s5] sm:$0xff] %v550
  %v552 = vld [vmem:[%s6] sm:$0xff]
  %v553 = vadd.f32 %v552, %v548
  %554 = vst [vmem:[%s6] sm:$0xff] %v553
  %s555 = sadd.s32 0, 0
  %s556 = smul.u32 16, %s555
  %p557 = scmp.lt.s32.totalorder %s556, 15
  %s558 = scalar_select %p557, %s556, 15
  %s559 = smul.addr %s558, 4
  %s560 = scalar_lea.vmem %s4, %s559
  // Predicated region
  $region22: #{_lambda_.4} parent=0 // pred_check
    _
  $region23: #{_lambda_.4} parent=0 // pred_check_branch
    %562 = sbr.rel (0) target = $region25
  $region24: #{_lambda_.4} parent=0 // pred_region
    %s563 = sadd.s32 0, 0
    %s564 = smul.u32 16, %s563
  $region25: #{_lambda_.4} parent=0 // pred_fallthru
    _
  // Predicated region
  $region26: #{_lambda_.4} parent=0 // pred_check
    _
  $region27: #{_lambda_.4} parent=0 // pred_check_branch
    %566 = sbr.rel (0) target = $region29
  $region28: #{_lambda_.4} parent=0 // pred_region
    _
  $region29: #{_lambda_.4} parent=0 // pred_fallthru
    _
  // Predicated region
  $region30: #{_lambda_.4} parent=0 // pred_check
    _
  $region31: #{_lambda_.4} parent=0 // pred_check_branch
    %568 = sbr.rel (0) target = $region33
  $region32: #{_lambda_.4} parent=0 // pred_region
    _
  $region33: #{_lambda_.4} parent=0 // pred_fallthru
    _
  // Predicated region
  $region34: #{_lambda_.4} parent=0 // pred_check
    _
  $region35: #{_lambda_.4} parent=0 // pred_check_branch
    %570 = sbr.rel (0) target = $region37
  $region36: #{_lambda_.4} parent=0 // pred_region
    %s571 = sadd.s32 0, 0
    %s572 = smul.u32 16, %s571
    %p573 = scmp.lt.s32.totalorder %s572, 15
    %s574 = scalar_select %p573, %s572, 15
    %s575 = smul.addr %s574, 4
    %s576 = scalar_lea.vmem %s4, %s575
  $region37: #{_lambda_.4} parent=0 // pred_fallthru
    _
  // Predicated region
  $region38: #{_lambda_.4} parent=0 // pred_check
    _
  $region39: #{_lambda_.4} parent=0 // pred_check_branch
    %578 = sbr.rel (0) target = $region41
  $region40: #{_lambda_.4} parent=0 // pred_region
    _
  $region41: #{_lambda_.4} parent=0 // pred_fallthru
    _
  // Predicated region
  $region42: #{_lambda_.4} parent=0 // pred_check
    _
  $region43: #{_lambda_.4} parent=0 // pred_check_branch
    %580 = sbr.rel (0) target = $region45
  $region44: #{_lambda_.4} parent=0 // pred_region
    _
  $region45: #{_lambda_.4} parent=0 // pred_fallthru
    _

// kernel: _lambda_.3
$region0: #{_lambda_.3}
  #allocation0 [shape = 'u32[]', space=smem, size = 0x4, offset = 0x4, fixed_abs, tag = 'smem constant byte address 0x4 - core index']
  #allocation1 [shape = 'u32[144,128]{1,0:T(1,128)}', space=vmem, size = 0x12000, scoped, tag = 'internal scratch']
  %s0 = inlined_call_operand.vmem [shape: bf16[288,40], index: 0, kind: input, shape index: {}]
  %s1 = inlined_call_operand.vmem [shape: bf16[40,128], index: 1, kind: input, shape index: {}]
  %s2 = inlined_call_operand.vmem [shape: f32[1,40], index: 2, kind: input, shape index: {}, may-alias: {2,3}]
  %s3 = inlined_call_operand.vmem [shape: f32[1,40], index: 3, kind: input, shape index: {}, may-alias: {2,3}]
  %s4 = inlined_call_operand.vmem [shape: bf16[288,128], index: 4, kind: output, shape index: {0}]
  %s5 = inlined_call_operand.vmem [shape: f32[8,128], index: 5, kind: output, shape index: {1}]
  %s6 = inlined_call_operand.vmem [shape: f32[8,128], index: 6, kind: output, shape index: {2}]
  %7 = xla_tuple %s4, %s5, %s6
  %s8 = sld [smem:[#allocation0]]
  $region46: #{_lambda_.3} parent=0
    _
  %s10 = ssub.s32 1, %s8
  %s11 = scalar_select 0, %s10, %s8
  // Predicated region
  $region2: #{_lambda_.3} parent=0 // pred_check
    _
  $region3: #{_lambda_.3} parent=0 // pred_check_branch
    %13 = sbr.rel (0) target = $region5
  $region4: #{_lambda_.3} parent=0 // pred_region
    %s14 = sadd.s32 0, 0
    %s15 = smul.u32 36, %s14
    %p16 = scmp.lt.s32.totalorder %s15, 35
    %s17 = scalar_select %p16, %s15, 35
    %s18 = smul.addr %s17, 4
    %s19 = scalar_lea.vmem %s0, %s18
    %s20 = sadd.s32 0, 0
    %s21 = smul.u32 36, %s20
  $region5: #{_lambda_.3} parent=0 // pred_fallthru
    _
  // Predicated region
  $region6: #{_lambda_.3} parent=0 // pred_check
    _
  $region7: #{_lambda_.3} parent=0 // pred_check_branch
    %23 = sbr.rel (0) target = $region9
  $region8: #{_lambda_.3} parent=0 // pred_region
    _
  $region9: #{_lambda_.3} parent=0 // pred_fallthru
    _
  // Predicated region
  $region10: #{_lambda_.3} parent=0 // pred_check
    _
  $region11: #{_lambda_.3} parent=0 // pred_check_branch
    %25 = sbr.rel (0) target = $region13
  $region12: #{_lambda_.3} parent=0 // pred_region
    _
  $region13: #{_lambda_.3} parent=0 // pred_fallthru
    _
  // Predicated region
  $region14: #{_lambda_.3} parent=0 // pred_check
    _
  $region15: #{_lambda_.3} parent=0 // pred_check_branch
    %27 = sbr.rel (0) target = $region17
  $region16: #{_lambda_.3} parent=0 // pred_region
    _
  $region17: #{_lambda_.3} parent=0 // pred_fallthru
    _
  %s28 = sadd.s32 0, 0
  %s29 = smul.u32 36, %s28
  %p30 = scmp.lt.s32.totalorder %s29, 35
  %s31 = scalar_select %p30, %s29, 35
  %s32 = smul.addr %s31, 4
  %s33 = scalar_lea.vmem %s0, %s32
  %s34 = sadd.s32 0, 0
  %s35 = smul.u32 36, %s34
  %p36 = scmp.lt.s32.totalorder %s35, 35
  %s37 = scalar_select %p36, %s35, 35
  %s38 = smul.addr %s37, 4
  %s39 = scalar_lea.vmem %s4, %s38
  %s40 = sadd.s32 0, 0
  %s41 = smul.u32 36, %s40
  %p42 = scmp.lt.s32.totalorder %s41, 35
  %s43 = scalar_select %p42, %s41, 35
  %s44 = smul.addr %s43, 4
  %s45 = scalar_lea.vmem %s0, %s44
  %s46 = sadd.s32 0, 0
  %s47 = smul.u32 36, %s46
  %s48 = sadd.s32 0, 0
  %s49 = smul.u32 36, %s48
  %p50 = scmp.lt.s32.totalorder %s49, 35
  %s51 = scalar_select %p50, %s49, 35
  %s52 = smul.addr %s51, 4
  %s53 = scalar_lea.vmem %s4, %s52
  %s54 = sadd.s32 0, 0
  %s55 = smul.u32 36, %s54
  %v57 = vld [vmem:[%s45] sm:$0xf]
  %v58 = vld [vmem:[%s45 + $0x4] sm:$0xf]
  %v59 = vld [vmem:[%s45 + $0x8] sm:$0xf]
  %v60 = vld [vmem:[%s45 + $0xc] sm:$0xf]
  %v61 = vld [vmem:[%s45 + $0x10] sm:$0xf]
  %v62 = vld [vmem:[%s45 + $0x14] sm:$0xf]
  %v63 = vld [vmem:[%s45 + $0x18] sm:$0xf]
  %v64 = vld [vmem:[%s45 + $0x1c] sm:$0xf]
  %v65 = vld [vmem:[%s45 + $0x20] sm:$0xf]
  %v66 = vld [vmem:[%s45 + $0x24] sm:$0xf]
  %v67 = vld [vmem:[%s45 + $0x28] sm:$0xf]
  %v68 = vld [vmem:[%s45 + $0x2c] sm:$0xf]
  %v69 = vld [vmem:[%s45 + $0x30] sm:$0xf]
  %v70 = vld [vmem:[%s45 + $0x34] sm:$0xf]
  %v71 = vld [vmem:[%s45 + $0x38] sm:$0xf]
  %v72 = vld [vmem:[%s45 + $0x3c] sm:$0xf]
  %v73 = vld [vmem:[%s45 + $0x40] sm:$0xf]
  %v74 = vld [vmem:[%s45 + $0x44] sm:$0xf]
  %v75 = vld [vmem:[%s45 + $0x48] sm:$0xf]
  %v76 = vld [vmem:[%s45 + $0x4c] sm:$0xf]
  %v77 = vld [vmem:[%s45 + $0x50] sm:$0xf]
  %v78 = vld [vmem:[%s45 + $0x54] sm:$0xf]
  %v79 = vld [vmem:[%s45 + $0x58] sm:$0xf]
  %v80 = vld [vmem:[%s45 + $0x5c] sm:$0xf]
  %v81 = vld [vmem:[%s45 + $0x60] sm:$0xf]
  %v82 = vld [vmem:[%s45 + $0x64] sm:$0xf]
  %v83 = vld [vmem:[%s45 + $0x68] sm:$0xf]
  %v84 = vld [vmem:[%s45 + $0x6c] sm:$0xf]
  %v85 = vld [vmem:[%s45 + $0x70] sm:$0xf]
  %v86 = vld [vmem:[%s45 + $0x74] sm:$0xf]
  %v87 = vld [vmem:[%s45 + $0x78] sm:$0xf]
  %v88 = vld [vmem:[%s45 + $0x7c] sm:$0xf]
  %v89 = vld [vmem:[%s45 + $0x80] sm:$0xf]
  %v90 = vld [vmem:[%s45 + $0x84] sm:$0xf]
  %v91 = vld [vmem:[%s45 + $0x88] sm:$0xf]
  %v92 = vld [vmem:[%s45 + $0x8c] sm:$0xf]
  %v93 = vld [vmem:[%s1] sm:$0xf]
  %v94 = vld [vmem:[%s1 + $0x4] sm:$0xf]
  %v95 = vld [vmem:[%s1 + $0x8] sm:$0xf]
  %v96 = vld [vmem:[%s1 + $0xc] sm:$0xf]
  %v97 = vld [vmem:[%s1 + $0x10] sm:$0xf]
  %v134 = vunpack.c.l.b16 %v57
  %v135 = vunpack.c.l.b16 %v58
  %v136 = vunpack.c.l.b16 %v59
  %v137 = vunpack.c.l.b16 %v60
  %v138 = vunpack.c.l.b16 %v61
  %v139 = vunpack.c.l.b16 %v62
  %v140 = vunpack.c.l.b16 %v63
  %v141 = vunpack.c.l.b16 %v64
  %v142 = vunpack.c.l.b16 %v65
  %v143 = vunpack.c.l.b16 %v66
  %v144 = vunpack.c.l.b16 %v67
  %v145 = vunpack.c.l.b16 %v68
  %v146 = vunpack.c.l.b16 %v69
  %v147 = vunpack.c.l.b16 %v70
  %v148 = vunpack.c.l.b16 %v71
  %v149 = vunpack.c.l.b16 %v72
  %v150 = vunpack.c.l.b16 %v73
  %v151 = vunpack.c.l.b16 %v74
  %v152 = vunpack.c.l.b16 %v75
  %v153 = vunpack.c.l.b16 %v76
  %v154 = vunpack.c.l.b16 %v77
  %v155 = vunpack.c.l.b16 %v78
  %v156 = vunpack.c.l.b16 %v79
  %v157 = vunpack.c.l.b16 %v80
  %v158 = vunpack.c.l.b16 %v81
  %v159 = vunpack.c.l.b16 %v82
  %v160 = vunpack.c.l.b16 %v83
  %v161 = vunpack.c.l.b16 %v84
  %v162 = vunpack.c.l.b16 %v85
  %v163 = vunpack.c.l.b16 %v86
  %v164 = vunpack.c.l.b16 %v87
  %v165 = vunpack.c.l.b16 %v88
  %v166 = vunpack.c.l.b16 %v89
  %v167 = vunpack.c.l.b16 %v90
  %v168 = vunpack.c.l.b16 %v91
  %v169 = vunpack.c.l.b16 %v92
  %v170 = vpack.c.b16 %v135, %v134
  %v171 = vpack.c.b16 %v137, %v136
  %v172 = vpack.c.b16 %v139, %v138
  %v173 = vpack.c.b16 %v141, %v140
  %v174 = vpack.c.b16 %v143, %v142
  %v175 = vpack.c.b16 %v145, %v144
  %v176 = vpack.c.b16 %v147, %v146
  %v177 = vpack.c.b16 %v149, %v148
  %v178 = vpack.c.b16 %v151, %v150
  %v179 = vpack.c.b16 %v153, %v152
  %v180 = vpack.c.b16 %v155, %v154
  %v181 = vpack.c.b16 %v157, %v156
  %v182 = vpack.c.b16 %v159, %v158
  %v183 = vpack.c.b16 %v161, %v160
  %v184 = vpack.c.b16 %v163, %v162
  %v185 = vpack.c.b16 %v165, %v164
  %v186 = vpack.c.b16 %v167, %v166
  %v187 = vpack.c.b16 %v169, %v168
  %v193 = vunpack.c.l.b16 %v93
  %v194 = vunpack.c.l.b16 %v94
  %v195 = vunpack.c.l.b16 %v95
  %v196 = vunpack.c.l.b16 %v96
  %v197 = vunpack.c.l.b16 %v97
  %v198 = vpack.c.b16 %v194, %v193
  %v199 = vpack.c.b16 %v196, %v195
  %v200 = vpack.c.b16 %v197, %v197
  %vm203 = vcmask 326656
  %v205 = vsel %vm203, %v170, 0
  %v208 = vsel %vm203, %v171, 0
  %v211 = vsel %vm203, %v172, 0
  %v214 = vsel %vm203, %v173, 0
  %v217 = vsel %vm203, %v174, 0
  %v220 = vsel %vm203, %v175, 0
  %v223 = vsel %vm203, %v176, 0
  %v226 = vsel %vm203, %v177, 0
  %v229 = vsel %vm203, %v178, 0
  %v232 = vsel %vm203, %v179, 0
  %v235 = vsel %vm203, %v180, 0
  %v238 = vsel %vm203, %v181, 0
  %v241 = vsel %vm203, %v182, 0
  %v244 = vsel %vm203, %v183, 0
  %v247 = vsel %vm203, %v184, 0
  %v250 = vsel %vm203, %v185, 0
  %v253 = vsel %vm203, %v186, 0
  %v256 = vsel %vm203, %v187, 0
  %vm258 = vcmask 1043456
  %v260 = vsel %vm258, %v200, 0
  %262 = vmatprep.subr.bf16.mxu0 0
  %263 = vmatpush1.bf16.msra.mxu0 %v198
  %264 = vmatprep.subr.bf16.mxu0 0
  %265 = vmatpush1.bf16.msra.mxu0 %v199
  %266 = vmatprep.subr.bf16.mxu0 0
  %267 = vmatpush1.bf16.msra.mxu0 %v260
  %268 = vmatprep.subr.bf16.mxu0 0
  %269 = vmatpush1.bf16.msra.mxu0 0
  %270 = vmatprep.subr.bf16.mxu0 0
  %271 = vmatpush1.bf16.msra.mxu0 0
  %272 = vmatprep.subr.bf16.mxu0 0
  %273 = vmatpush1.bf16.msra.mxu0 0
  %274 = vmatprep.subr.bf16.mxu0 0
  %275 = vmatpush1.bf16.msra.mxu0 0
  %276 = vmatprep.subr.bf16.mxu0 0
  %277 = vmatpush1.bf16.msra.mxu0 0
  %278 = vmatprep.subr.bf16.mxu0 0
  %279 = vmatpush1.bf16.msra.mxu0 0
  %280 = vmatprep.subr.bf16.mxu0 0
  %281 = vmatpush1.bf16.msra.mxu0 0
  %282 = vmatprep.subr.bf16.mxu0 0
  %283 = vmatpush1.bf16.msra.mxu0 0
  %284 = vmatprep.subr.bf16.mxu0 0
  %285 = vmatpush1.bf16.msra.mxu0 0
  %286 = vmatprep.subr.bf16.mxu0 0
  %287 = vmatpush1.bf16.msra.mxu0 0
  %288 = vmatprep.subr.bf16.mxu0 0
  %289 = vmatpush1.bf16.msra.mxu0 0
  %290 = vmatprep.subr.bf16.mxu0 0
  %291 = vmatpush1.bf16.msra.mxu0 0
  %292 = vmatprep.subr.bf16.mxu0 0
  %293 = vmatpush1.bf16.msra.mxu0 0
  %294 = vmatprep.mubr.bf16.mxu0 0
  %295 = vmatmul.mubr.bf16.gmra.mrb[0].mxu0 %v205
  %v296 = vpop.f32.mrb[0].mxu0
  %v297 = vadd.f32 0.0, %v296
  %v298 = vpop.f32.mrb[0].mxu0
  %v299 = vpop.f32.mrb[0].mxu0
  %v300 = vadd.f32 0.0, %v299
  %v301 = vpop.f32.mrb[0].mxu0
  %302 = vmatprep.mubr.bf16.mxu0 0
  %303 = vmatmul.mubr.bf16.gmra.mrb[0].mxu0 %v208
  %v304 = vpop.f32.mrb[0].mxu0
  %v305 = vadd.f32 0.0, %v304
  %v306 = vpop.f32.mrb[0].mxu0
  %v307 = vpop.f32.mrb[0].mxu0
  %v308 = vadd.f32 0.0, %v307
  %v309 = vpop.f32.mrb[0].mxu0
  %310 = vmatprep.mubr.bf16.mxu0 0
  %311 = vmatmul.mubr.bf16.gmra.mrb[0].mxu0 %v211
  %v312 = vpop.f32.mrb[0].mxu0
  %v313 = vadd.f32 0.0, %v312
  %v314 = vpop.f32.mrb[0].mxu0
  %v315 = vpop.f32.mrb[0].mxu0
  %v316 = vadd.f32 0.0, %v315
  %v317 = vpop.f32.mrb[0].mxu0
  %318 = vmatprep.mubr.bf16.mxu0 0
  %319 = vmatmul.mubr.bf16.gmra.mrb[0].mxu0 %v214
  %v320 = vpop.f32.mrb[0].mxu0
  %v321 = vadd.f32 0.0, %v320
  %v322 = vpop.f32.mrb[0].mxu0
  %v323 = vpop.f32.mrb[0].mxu0
  %v324 = vadd.f32 0.0, %v323
  %v325 = vpop.f32.mrb[0].mxu0
  %326 = vmatprep.mubr.bf16.mxu0 0
  %327 = vmatmul.mubr.bf16.gmra.mrb[0].mxu0 %v217
  %v328 = vpop.f32.mrb[0].mxu0
  %v329 = vadd.f32 0.0, %v328
  %v330 = vpop.f32.mrb[0].mxu0
  %v331 = vpop.f32.mrb[0].mxu0
  %v332 = vadd.f32 0.0, %v331
  %v333 = vpop.f32.mrb[0].mxu0
  %334 = vmatprep.mubr.bf16.mxu0 0
  %335 = vmatmul.mubr.bf16.gmra.mrb[0].mxu0 %v220
  %v336 = vpop.f32.mrb[0].mxu0
  %v337 = vadd.f32 0.0, %v336
  %v338 = vpop.f32.mrb[0].mxu0
  %v339 = vpop.f32.mrb[0].mxu0
  %v340 = vadd.f32 0.0, %v339
  %v341 = vpop.f32.mrb[0].mxu0
  %342 = vmatprep.mubr.bf16.mxu0 0
  %343 = vmatmul.mubr.bf16.gmra.mrb[0].mxu0 %v223
  %v344 = vpop.f32.mrb[0].mxu0
  %v345 = vadd.f32 0.0, %v344
  %v346 = vpop.f32.mrb[0].mxu0
  %v347 = vpop.f32.mrb[0].mxu0
  %v348 = vadd.f32 0.0, %v347
  %v349 = vpop.f32.mrb[0].mxu0
  %350 = vmatprep.mubr.bf16.mxu0 0
  %351 = vmatmul.mubr.bf16.gmra.mrb[0].mxu0 %v226
  %v352 = vpop.f32.mrb[0].mxu0
  %v353 = vadd.f32 0.0, %v352
  %v354 = vpop.f32.mrb[0].mxu0
  %v355 = vpop.f32.mrb[0].mxu0
  %v356 = vadd.f32 0.0, %v355
  %v357 = vpop.f32.mrb[0].mxu0
  %358 = vmatprep.mubr.bf16.mxu0 0
  %359 = vmatmul.mubr.bf16.gmra.mrb[0].mxu0 %v229
  %v360 = vpop.f32.mrb[0].mxu0
  %v361 = vadd.f32 0.0, %v360
  %v362 = vpop.f32.mrb[0].mxu0
  %v363 = vpop.f32.mrb[0].mxu0
  %v364 = vadd.f32 0.0, %v363
  %v365 = vpop.f32.mrb[0].mxu0
  %366 = vmatprep.mubr.bf16.mxu0 0
  %367 = vmatmul.mubr.bf16.gmra.mrb[0].mxu0 %v232
  %v368 = vpop.f32.mrb[0].mxu0
  %v369 = vadd.f32 0.0, %v368
  %v370 = vpop.f32.mrb[0].mxu0
  %v371 = vpop.f32.mrb[0].mxu0
  %v372 = vadd.f32 0.0, %v371
  %v373 = vpop.f32.mrb[0].mxu0
  %374 = vmatprep.mubr.bf16.mxu0 0
  %375 = vmatmul.mubr.bf16.gmra.mrb[0].mxu0 %v235
  %v376 = vpop.f32.mrb[0].mxu0
  %v377 = vadd.f32 0.0, %v376
  %v378 = vpop.f32.mrb[0].mxu0
  %v379 = vpop.f32.mrb[0].mxu0
  %v380 = vadd.f32 0.0, %v379
  %v381 = vpop.f32.mrb[0].mxu0
  %382 = vmatprep.mubr.bf16.mxu0 0
  %383 = vmatmul.mubr.bf16.gmra.mrb[0].mxu0 %v238
  %v384 = vpop.f32.mrb[0].mxu0
  %v385 = vadd.f32 0.0, %v384
  %v386 = vpop.f32.mrb[0].mxu0
  %v387 = vpop.f32.mrb[0].mxu0
  %v388 = vadd.f32 0.0, %v387
  %v389 = vpop.f32.mrb[0].mxu0
  %390 = vmatprep.mubr.bf16.mxu0 0
  %391 = vmatmul.mubr.bf16.gmra.mrb[0].mxu0 %v241
  %v392 = vpop.f32.mrb[0].mxu0
  %v393 = vadd.f32 0.0, %v392
  %v394 = vpop.f32.mrb[0].mxu0
  %v395 = vpop.f32.mrb[0].mxu0
  %v396 = vadd.f32 0.0, %v395
  %v397 = vpop.f32.mrb[0].mxu0
  %398 = vmatprep.mubr.bf16.mxu0 0
  %399 = vmatmul.mubr.bf16.gmra.mrb[0].mxu0 %v244
  %v400 = vpop.f32.mrb[0].mxu0
  %v401 = vadd.f32 0.0, %v400
  %v402 = vpop.f32.mrb[0].mxu0
  %v403 = vpop.f32.mrb[0].mxu0
  %v404 = vadd.f32 0.0, %v403
  %v405 = vpop.f32.mrb[0].mxu0
  %406 = vmatprep.mubr.bf16.mxu0 0
  %407 = vmatmul.mubr.bf16.gmra.mrb[0].mxu0 %v247
  %v408 = vpop.f32.mrb[0].mxu0
  %v409 = vadd.f32 0.0, %v408
  %v410 = vpop.f32.mrb[0].mxu0
  %v411 = vpop.f32.mrb[0].mxu0
  %v412 = vadd.f32 0.0, %v411
  %v413 = vpop.f32.mrb[0].mxu0
  %414 = vmatprep.mubr.bf16.mxu0 0
  %415 = vmatmul.mubr.bf16.gmra.mrb[0].mxu0 %v250
  %v416 = vpop.f32.mrb[0].mxu0
  %v417 = vadd.f32 0.0, %v416
  %v418 = vpop.f32.mrb[0].mxu0
  %v419 = vpop.f32.mrb[0].mxu0
  %v420 = vadd.f32 0.0, %v419
  %v421 = vpop.f32.mrb[0].mxu0
  %422 = vmatprep.mubr.bf16.mxu0 0
  %423 = vmatmul.mubr.bf16.gmra.mrb[0].mxu0 %v253
  %v424 = vpop.f32.mrb[0].mxu0
  %v425 = vadd.f32 0.0, %v424
  %v426 = vpop.f32.mrb[0].mxu0
  %v427 = vpop.f32.mrb[0].mxu0
  %v428 = vadd.f32 0.0, %v427
  %v429 = vpop.f32.mrb[0].mxu0
  %430 = vmatprep.mubr.bf16.mxu0 0
  %431 = vmatmul.mubr.bf16.gmra.mrb[0].mxu0 %v256
  %v432 = vpop.f32.mrb[0].mxu0
  %v433 = vadd.f32 0.0, %v432
  %v434 = vpop.f32.mrb[0].mxu0
  %v435 = vpop.f32.mrb[0].mxu0
  %v436 = vadd.f32 0.0, %v435
  %v437 = vpop.f32.mrb[0].mxu0
  %438 = vdwg.mxu0
  %v439 = vpack.c.bf16 %v300, %v297
  %v440 = vpack.c.bf16 %v308, %v305
  %v441 = vpack.c.bf16 %v316, %v313
  %v442 = vpack.c.bf16 %v324, %v321
  %v443 = vpack.c.bf16 %v332, %v329
  %v444 = vpack.c.bf16 %v340, %v337
  %v445 = vpack.c.bf16 %v348, %v345
  %v446 = vpack.c.bf16 %v356, %v353
  %v447 = vpack.c.bf16 %v364, %v361
  %v448 = vpack.c.bf16 %v372, %v369
  %v449 = vpack.c.bf16 %v380, %v377
  %v450 = vpack.c.bf16 %v388, %v385
  %v451 = vpack.c.bf16 %v396, %v393
  %v452 = vpack.c.bf16 %v404, %v401
  %v453 = vpack.c.bf16 %v412, %v409
  %v454 = vpack.c.bf16 %v420, %v417
  %v455 = vpack.c.bf16 %v428, %v425
  %v456 = vpack.c.bf16 %v436, %v433
  %v475 = vunpack.c.l.b16 %v439
  %v476 = vunpack.c.h.b16 %v439
  %v477 = vunpack.c.l.b16 %v440
  %v478 = vunpack.c.h.b16 %v440
  %v479 = vunpack.c.l.b16 %v441
  %v480 = vunpack.c.h.b16 %v441
  %v481 = vunpack.c.l.b16 %v442
  %v482 = vunpack.c.h.b16 %v442
  %v483 = vunpack.c.l.b16 %v443
  %v484 = vunpack.c.h.b16 %v443
  %v485 = vunpack.c.l.b16 %v444
  %v486 = vunpack.c.h.b16 %v444
  %v487 = vunpack.c.l.b16 %v445
  %v488 = vunpack.c.h.b16 %v445
  %v489 = vunpack.c.l.b16 %v446
  %v490 = vunpack.c.h.b16 %v446
  %v491 = vunpack.c.l.b16 %v447
  %v492 = vunpack.c.h.b16 %v447
  %v493 = vunpack.c.l.b16 %v448
  %v494 = vunpack.c.h.b16 %v448
  %v495 = vunpack.c.l.b16 %v449
  %v496 = vunpack.c.h.b16 %v449
  %v497 = vunpack.c.l.b16 %v450
  %v498 = vunpack.c.h.b16 %v450
  %v499 = vunpack.c.l.b16 %v451
  %v500 = vunpack.c.h.b16 %v451
  %v501 = vunpack.c.l.b16 %v452
  %v502 = vunpack.c.h.b16 %v452
  %v503 = vunpack.c.l.b16 %v453
  %v504 = vunpack.c.h.b16 %v453
  %v505 = vunpack.c.l.b16 %v454
  %v506 = vunpack.c.h.b16 %v454
  %v507 = vunpack.c.l.b16 %v455
  %v508 = vunpack.c.h.b16 %v455
  %v509 = vunpack.c.l.b16 %v456
  %v510 = vunpack.c.h.b16 %v456
  %v511 = vpack.c.b16 %v475, %v475
  %v512 = vpack.c.b16 %v476, %v476
  %v513 = vpack.c.b16 %v477, %v477
  %v514 = vpack.c.b16 %v478, %v478
  %v515 = vpack.c.b16 %v479, %v479
  %v516 = vpack.c.b16 %v480, %v480
  %v517 = vpack.c.b16 %v481, %v481
  %v518 = vpack.c.b16 %v482, %v482
  %v519 = vpack.c.b16 %v483, %v483
  %v520 = vpack.c.b16 %v484, %v484
  %v521 = vpack.c.b16 %v485, %v485
  %v522 = vpack.c.b16 %v486, %v486
  %v523 = vpack.c.b16 %v487, %v487
  %v524 = vpack.c.b16 %v488, %v488
  %v525 = vpack.c.b16 %v489, %v489
  %v526 = vpack.c.b16 %v490, %v490
  %v527 = vpack.c.b16 %v491, %v491
  %v528 = vpack.c.b16 %v492, %v492
  %v529 = vpack.c.b16 %v493, %v493
  %v530 = vpack.c.b16 %v494, %v494
  %v531 = vpack.c.b16 %v495, %v495
  %v532 = vpack.c.b16 %v496, %v496
  %v533 = vpack.c.b16 %v497, %v497
  %v534 = vpack.c.b16 %v498, %v498
  %v535 = vpack.c.b16 %v499, %v499
  %v536 = vpack.c.b16 %v500, %v500
  %v537 = vpack.c.b16 %v501, %v501
  %v538 = vpack.c.b16 %v502, %v502
  %v539 = vpack.c.b16 %v503, %v503
  %v540 = vpack.c.b16 %v504, %v504
  %v541 = vpack.c.b16 %v505, %v505
  %v542 = vpack.c.b16 %v506, %v506
  %v543 = vpack.c.b16 %v507, %v507
  %v544 = vpack.c.b16 %v508, %v508
  %v545 = vpack.c.b16 %v509, %v509
  %v546 = vpack.c.b16 %v510, %v510
  %583 = vst [vmem:[%s53] sm:$0xf] %v511
  %584 = vst [vmem:[%s53 + $0x4] sm:$0xf] %v512
  %585 = vst [vmem:[%s53 + $0x8] sm:$0xf] %v513
  %586 = vst [vmem:[%s53 + $0xc] sm:$0xf] %v514
  %587 = vst [vmem:[%s53 + $0x10] sm:$0xf] %v515
  %588 = vst [vmem:[%s53 + $0x14] sm:$0xf] %v516
  %589 = vst [vmem:[%s53 + $0x18] sm:$0xf] %v517
  %590 = vst [vmem:[%s53 + $0x1c] sm:$0xf] %v518
  %591 = vst [vmem:[%s53 + $0x20] sm:$0xf] %v519
  %592 = vst [vmem:[%s53 + $0x24] sm:$0xf] %v520
  %593 = vst [vmem:[%s53 + $0x28] sm:$0xf] %v521
  %594 = vst [vmem:[%s53 + $0x2c] sm:$0xf] %v522
  %595 = vst [vmem:[%s53 + $0x30] sm:$0xf] %v523
  %596 = vst [vmem:[%s53 + $0x34] sm:$0xf] %v524
  %597 = vst [vmem:[%s53 + $0x38] sm:$0xf] %v525
  %598 = vst [vmem:[%s53 + $0x3c] sm:$0xf] %v526
  %599 = vst [vmem:[%s53 + $0x40] sm:$0xf] %v527
  %600 = vst [vmem:[%s53 + $0x44] sm:$0xf] %v528
  %601 = vst [vmem:[%s53 + $0x48] sm:$0xf] %v529
  %602 = vst [vmem:[%s53 + $0x4c] sm:$0xf] %v530
  %603 = vst [vmem:[%s53 + $0x50] sm:$0xf] %v531
  %604 = vst [vmem:[%s53 + $0x54] sm:$0xf] %v532
  %605 = vst [vmem:[%s53 + $0x58] sm:$0xf] %v533
  %606 = vst [vmem:[%s53 + $0x5c] sm:$0xf] %v534
  %607 = vst [vmem:[%s53 + $0x60] sm:$0xf] %v535
  %608 = vst [vmem:[%s53 + $0x64] sm:$0xf] %v536
  %609 = vst [vmem:[%s53 + $0x68] sm:$0xf] %v537
  %610 = vst [vmem:[%s53 + $0x6c] sm:$0xf] %v538
  %611 = vst [vmem:[%s53 + $0x70] sm:$0xf] %v539
  %612 = vst [vmem:[%s53 + $0x74] sm:$0xf] %v540
  %613 = vst [vmem:[%s53 + $0x78] sm:$0xf] %v541
  %614 = vst [vmem:[%s53 + $0x7c] sm:$0xf] %v542
  %615 = vst [vmem:[%s53 + $0x80] sm:$0xf] %v543
  %616 = vst [vmem:[%s53 + $0x84] sm:$0xf] %v544
  %617 = vst [vmem:[%s53 + $0x88] sm:$0xf] %v545
  %618 = vst [vmem:[%s53 + $0x8c] sm:$0xf] %v546
  %p619 = scmp.eq.s32.totalorder 0, 0
  // Predicated region
  $region18: #{_lambda_.3} parent=0 // pred_check
    %p620 = pneg %p619
  $region19: #{_lambda_.3} parent=0 // pred_check_branch
    %622 = sbr.rel (%p620) target = $region21
  $region20: #{_lambda_.3} parent=0 // pred_region
    %623 = vst [vmem:[%s5] sm:$0xff] 0.0
    %624 = vst [vmem:[%s6] sm:$0xff] 0.0
  $region21: #{_lambda_.3} parent=0 // pred_fallthru
    _
  %s625 = sadd.s32 0, 0
  %s626 = smul.u32 %s625, 288
  %v627 = vlaneseq
  %v628 = vshrl.u32 %v627, 7
  %v629 = vadd.s32 %v628, 8
  %v630 = vadd.s32 %v628, 16
  %v631 = vadd.s32 %v628, 24
  %v632 = vadd.s32 %v628, 32
  %v633 = vadd.s32 %v628, 40
  %v634 = vadd.s32 %v628, 48
  %v635 = vadd.s32 %v628, 56
  %v636 = vadd.s32 %v628, 64
  %v637 = vadd.s32 %v628, 72
  %v638 = vadd.s32 %v628, 80
  %v639 = vadd.s32 %v628, 88
  %v640 = vadd.s32 %v628, 96
  %v641 = vadd.s32 %v628, 104
  %v642 = vadd.s32 %v628, 112
  %v643 = vadd.s32 %v628, 120
  %v644 = vadd.s32 %v628, 128
  %v645 = vadd.s32 %v628, 136
  %v646 = vadd.s32 %v628, 144
  %v647 = vadd.s32 %v628, 152
  %v648 = vadd.s32 %v628, 160
  %v649 = vadd.s32 %v628, 168
  %v650 = vadd.s32 %v628, 176
  %v651 = vadd.s32 %v628, 184
  %v652 = vadd.s32 %v628, 192
  %v653 = vadd.s32 %v628, 200
  %v654 = vadd.s32 %v628, 208
  %v655 = vadd.s32 %v628, 216
  %v656 = vadd.s32 %v628, 224
  %v657 = vadd.s32 %v628, 232
  %v658 = vadd.s32 %v628, 240
  %v659 = vadd.s32 %v628, 248
  %v660 = vadd.s32 %v628, 256
  %v661 = vadd.s32 %v628, 264
  %v662 = vadd.s32 %v628, 272
  %v663 = vadd.s32 %v628, 280
  %v664 = vstv %s626
  %v665 = vadd.s32 %v664, %v628
  %v666 = vadd.s32 %v664, %v629
  %v667 = vadd.s32 %v664, %v630
  %v668 = vadd.s32 %v664, %v631
  %v669 = vadd.s32 %v664, %v632
  %v670 = vadd.s32 %v664, %v633
  %v671 = vadd.s32 %v664, %v634
  %v672 = vadd.s32 %v664, %v635
  %v673 = vadd.s32 %v664, %v636
  %v674 = vadd.s32 %v664, %v637
  %v675 = vadd.s32 %v664, %v638
  %v676 = vadd.s32 %v664, %v639
  %v677 = vadd.s32 %v664, %v640
  %v678 = vadd.s32 %v664, %v641
  %v679 = vadd.s32 %v664, %v642
  %v680 = vadd.s32 %v664, %v643
  %v681 = vadd.s32 %v664, %v644
  %v682 = vadd.s32 %v664, %v645
  %v683 = vadd.s32 %v664, %v646
  %v684 = vadd.s32 %v664, %v647
  %v685 = vadd.s32 %v664, %v648
  %v686 = vadd.s32 %v664, %v649
  %v687 = vadd.s32 %v664, %v650
  %v688 = vadd.s32 %v664, %v651
  %v689 = vadd.s32 %v664, %v652
  %v690 = vadd.s32 %v664, %v653
  %v691 = vadd.s32 %v664, %v654
  %v692 = vadd.s32 %v664, %v655
  %v693 = vadd.s32 %v664, %v656
  %v694 = vadd.s32 %v664, %v657
  %v695 = vadd.s32 %v664, %v658
  %v696 = vadd.s32 %v664, %v659
  %v697 = vadd.s32 %v664, %v660
  %v698 = vadd.s32 %v664, %v661
  %v699 = vadd.s32 %v664, %v662
  %v700 = vadd.s32 %v664, %v663
  %vm701 = vcmp.lt.s32.totalorder %v665, 288
  %vm702 = vcmp.lt.s32.totalorder %v666, 288
  %vm703 = vcmp.lt.s32.totalorder %v667, 288
  %vm704 = vcmp.lt.s32.totalorder %v668, 288
  %vm705 = vcmp.lt.s32.totalorder %v669, 288
  %vm706 = vcmp.lt.s32.totalorder %v670, 288
  %vm707 = vcmp.lt.s32.totalorder %v671, 288
  %vm708 = vcmp.lt.s32.totalorder %v672, 288
  %vm709 = vcmp.lt.s32.totalorder %v673, 288
  %vm710 = vcmp.lt.s32.totalorder %v674, 288
  %vm711 = vcmp.lt.s32.totalorder %v675, 288
  %vm712 = vcmp.lt.s32.totalorder %v676, 288
  %vm713 = vcmp.lt.s32.totalorder %v677, 288
  %vm714 = vcmp.lt.s32.totalorder %v678, 288
  %vm715 = vcmp.lt.s32.totalorder %v679, 288
  %vm716 = vcmp.lt.s32.totalorder %v680, 288
  %vm717 = vcmp.lt.s32.totalorder %v681, 288
  %vm718 = vcmp.lt.s32.totalorder %v682, 288
  %vm719 = vcmp.lt.s32.totalorder %v683, 288
  %vm720 = vcmp.lt.s32.totalorder %v684, 288
  %vm721 = vcmp.lt.s32.totalorder %v685, 288
  %vm722 = vcmp.lt.s32.totalorder %v686, 288
  %vm723 = vcmp.lt.s32.totalorder %v687, 288
  %vm724 = vcmp.lt.s32.totalorder %v688, 288
  %vm725 = vcmp.lt.s32.totalorder %v689, 288
  %vm726 = vcmp.lt.s32.totalorder %v690, 288
  %vm727 = vcmp.lt.s32.totalorder %v691, 288
  %vm728 = vcmp.lt.s32.totalorder %v692, 288
  %vm729 = vcmp.lt.s32.totalorder %v693, 288
  %vm730 = vcmp.lt.s32.totalorder %v694, 288
  %vm731 = vcmp.lt.s32.totalorder %v695, 288
  %vm732 = vcmp.lt.s32.totalorder %v696, 288
  %vm733 = vcmp.lt.s32.totalorder %v697, 288
  %vm734 = vcmp.lt.s32.totalorder %v698, 288
  %vm735 = vcmp.lt.s32.totalorder %v699, 288
  %vm736 = vcmp.lt.s32.totalorder %v700, 288
  %v737 = vsel %vm701, 1, 0
  %v738 = vsel %vm702, 1, 0
  %v739 = vsel %vm703, 1, 0
  %v740 = vsel %vm704, 1, 0
  %v741 = vsel %vm705, 1, 0
  %v742 = vsel %vm706, 1, 0
  %v743 = vsel %vm707, 1, 0
  %v744 = vsel %vm708, 1, 0
  %v745 = vsel %vm709, 1, 0
  %v746 = vsel %vm710, 1, 0
  %v747 = vsel %vm711, 1, 0
  %v748 = vsel %vm712, 1, 0
  %v749 = vsel %vm713, 1, 0
  %v750 = vsel %vm714, 1, 0
  %v751 = vsel %vm715, 1, 0
  %v752 = vsel %vm716, 1, 0
  %v753 = vsel %vm717, 1, 0
  %v754 = vsel %vm718, 1, 0
  %v755 = vsel %vm719, 1, 0
  %v756 = vsel %vm720, 1, 0
  %v757 = vsel %vm721, 1, 0
  %v758 = vsel %vm722, 1, 0
  %v759 = vsel %vm723, 1, 0
  %v760 = vsel %vm724, 1, 0
  %v761 = vsel %vm725, 1, 0
  %v762 = vsel %vm726, 1, 0
  %v763 = vsel %vm727, 1, 0
  %v764 = vsel %vm728, 1, 0
  %v765 = vsel %vm729, 1, 0
  %v766 = vsel %vm730, 1, 0
  %v767 = vsel %vm731, 1, 0
  %v768 = vsel %vm732, 1, 0
  %v769 = vsel %vm733, 1, 0
  %v770 = vsel %vm734, 1, 0
  %v771 = vsel %vm735, 1, 0
  %v772 = vsel %vm736, 1, 0
  %vm773 = vcmp.eq.s32.totalorder %v737, 1
  %vm774 = vcmp.eq.s32.totalorder %v738, 1
  %vm775 = vcmp.eq.s32.totalorder %v739, 1
  %vm776 = vcmp.eq.s32.totalorder %v740, 1
  %vm777 = vcmp.eq.s32.totalorder %v741, 1
  %vm778 = vcmp.eq.s32.totalorder %v742, 1
  %vm779 = vcmp.eq.s32.totalorder %v743, 1
  %vm780 = vcmp.eq.s32.totalorder %v744, 1
  %vm781 = vcmp.eq.s32.totalorder %v745, 1
  %vm782 = vcmp.eq.s32.totalorder %v746, 1
  %vm783 = vcmp.eq.s32.totalorder %v747, 1
  %vm784 = vcmp.eq.s32.totalorder %v748, 1
  %vm785 = vcmp.eq.s32.totalorder %v749, 1
  %vm786 = vcmp.eq.s32.totalorder %v750, 1
  %vm787 = vcmp.eq.s32.totalorder %v751, 1
  %vm788 = vcmp.eq.s32.totalorder %v752, 1
  %vm789 = vcmp.eq.s32.totalorder %v753, 1
  %vm790 = vcmp.eq.s32.totalorder %v754, 1
  %vm791 = vcmp.eq.s32.totalorder %v755, 1
  %vm792 = vcmp.eq.s32.totalorder %v756, 1
  %vm793 = vcmp.eq.s32.totalorder %v757, 1
  %vm794 = vcmp.eq.s32.totalorder %v758, 1
  %vm795 = vcmp.eq.s32.totalorder %v759, 1
  %vm796 = vcmp.eq.s32.totalorder %v760, 1
  %vm797 = vcmp.eq.s32.totalorder %v761, 1
  %vm798 = vcmp.eq.s32.totalorder %v762, 1
  %vm799 = vcmp.eq.s32.totalorder %v763, 1
  %vm800 = vcmp.eq.s32.totalorder %v764, 1
  %vm801 = vcmp.eq.s32.totalorder %v765, 1
  %vm802 = vcmp.eq.s32.totalorder %v766, 1
  %vm803 = vcmp.eq.s32.totalorder %v767, 1
  %vm804 = vcmp.eq.s32.totalorder %v768, 1
  %vm805 = vcmp.eq.s32.totalorder %v769, 1
  %vm806 = vcmp.eq.s32.totalorder %v770, 1
  %vm807 = vcmp.eq.s32.totalorder %v771, 1
  %vm808 = vcmp.eq.s32.totalorder %v772, 1
  %v809 = vsel %vm773, %v297, 0.0
  %v810 = vsel %vm774, %v300, 0.0
  %v811 = vsel %vm775, %v305, 0.0
  %v812 = vsel %vm776, %v308, 0.0
  %v813 = vsel %vm777, %v313, 0.0
  %v814 = vsel %vm778, %v316, 0.0
  %v815 = vsel %vm779, %v321, 0.0
  %v816 = vsel %vm780, %v324, 0.0
  %v817 = vsel %vm781, %v329, 0.0
  %v818 = vsel %vm782, %v332, 0.0
  %v819 = vsel %vm783, %v337, 0.0
  %v820 = vsel %vm784, %v340, 0.0
  %v821 = vsel %vm785, %v345, 0.0
  %v822 = vsel %vm786, %v348, 0.0
  %v823 = vsel %vm787, %v353, 0.0
  %v824 = vsel %vm788, %v356, 0.0
  %v825 = vsel %vm789, %v361, 0.0
  %v826 = vsel %vm790, %v364, 0.0
  %v827 = vsel %vm791, %v369, 0.0
  %v828 = vsel %vm792, %v372, 0.0
  %v829 = vsel %vm793, %v377, 0.0
  %v830 = vsel %vm794, %v380, 0.0
  %v831 = vsel %vm795, %v385, 0.0
  %v832 = vsel %vm796, %v388, 0.0
  %v833 = vsel %vm797, %v393, 0.0
  %v834 = vsel %vm798, %v396, 0.0
  %v835 = vsel %vm799, %v401, 0.0
  %v836 = vsel %vm800, %v404, 0.0
  %v837 = vsel %vm801, %v409, 0.0
  %v838 = vsel %vm802, %v412, 0.0
  %v839 = vsel %vm803, %v417, 0.0
  %v840 = vsel %vm804, %v420, 0.0
  %v841 = vsel %vm805, %v425, 0.0
  %v842 = vsel %vm806, %v428, 0.0
  %v843 = vsel %vm807, %v433, 0.0
  %v844 = vsel %vm808, %v436, 0.0
  %v845 = vadd.f32 %v809, %v810
  %v846 = vadd.f32 %v845, %v811
  %v847 = vadd.f32 %v846, %v812
  %v848 = vadd.f32 %v847, %v813
  %v849 = vadd.f32 %v848, %v814
  %v850 = vadd.f32 %v849, %v815
  %v851 = vadd.f32 %v850, %v816
  %v852 = vadd.f32 %v851, %v817
  %v853 = vadd.f32 %v852, %v818
  %v854 = vadd.f32 %v853, %v819
  %v855 = vadd.f32 %v854, %v820
  %v856 = vadd.f32 %v855, %v821
  %v857 = vadd.f32 %v856, %v822
  %v858 = vadd.f32 %v857, %v823
  %v859 = vadd.f32 %v858, %v824
  %v860 = vadd.f32 %v859, %v825
  %v861 = vadd.f32 %v860, %v826
  %v862 = vadd.f32 %v861, %v827
  %v863 = vadd.f32 %v862, %v828
  %v864 = vadd.f32 %v863, %v829
  %v865 = vadd.f32 %v864, %v830
  %v866 = vadd.f32 %v865, %v831
  %v867 = vadd.f32 %v866, %v832
  %v868 = vadd.f32 %v867, %v833
  %v869 = vadd.f32 %v868, %v834
  %v870 = vadd.f32 %v869, %v835
  %v871 = vadd.f32 %v870, %v836
  %v872 = vadd.f32 %v871, %v837
  %v873 = vadd.f32 %v872, %v838
  %v874 = vadd.f32 %v873, %v839
  %v875 = vadd.f32 %v874, %v840
  %v876 = vadd.f32 %v875, %v841
  %v877 = vadd.f32 %v876, %v842
  %v878 = vadd.f32 %v877, %v843
  %v879 = vadd.f32 %v878, %v844
  %v880 = vrot.slane %v879, 4
  %v881 = vadd.f32 %v879, %v880
  %v882 = vrot.slane %v881, 2
  %v883 = vadd.f32 %v881, %v882
  %v884 = vrot.slane %v883, 1
  %v885 = vadd.f32 %v883, %v884
  %v886 = vmul.f32 %v809, %v809
  %v887 = vmul.f32 %v810, %v810
  %v888 = vmul.f32 %v811, %v811
  %v889 = vmul.f32 %v812, %v812
  %v890 = vmul.f32 %v813, %v813
  %v891 = vmul.f32 %v814, %v814
  %v892 = vmul.f32 %v815, %v815
  %v893 = vmul.f32 %v816, %v816
  %v894 = vmul.f32 %v817, %v817
  %v895 = vmul.f32 %v818, %v818
  %v896 = vmul.f32 %v819, %v819
  %v897 = vmul.f32 %v820, %v820
  %v898 = vmul.f32 %v821, %v821
  %v899 = vmul.f32 %v822, %v822
  %v900 = vmul.f32 %v823, %v823
  %v901 = vmul.f32 %v824, %v824
  %v902 = vmul.f32 %v825, %v825
  %v903 = vmul.f32 %v826, %v826
  %v904 = vmul.f32 %v827, %v827
  %v905 = vmul.f32 %v828, %v828
  %v906 = vmul.f32 %v829, %v829
  %v907 = vmul.f32 %v830, %v830
  %v908 = vmul.f32 %v831, %v831
  %v909 = vmul.f32 %v832, %v832
  %v910 = vmul.f32 %v833, %v833
  %v911 = vmul.f32 %v834, %v834
  %v912 = vmul.f32 %v835, %v835
  %v913 = vmul.f32 %v836, %v836
  %v914 = vmul.f32 %v837, %v837
  %v915 = vmul.f32 %v838, %v838
  %v916 = vmul.f32 %v839, %v839
  %v917 = vmul.f32 %v840, %v840
  %v918 = vmul.f32 %v841, %v841
  %v919 = vmul.f32 %v842, %v842
  %v920 = vmul.f32 %v843, %v843
  %v921 = vmul.f32 %v844, %v844
  %v922 = vadd.f32 %v886, %v887
  %v923 = vadd.f32 %v922, %v888
  %v924 = vadd.f32 %v923, %v889
  %v925 = vadd.f32 %v924, %v890
  %v926 = vadd.f32 %v925, %v891
  %v927 = vadd.f32 %v926, %v892
  %v928 = vadd.f32 %v927, %v893
  %v929 = vadd.f32 %v928, %v894
  %v930 = vadd.f32 %v929, %v895
  %v931 = vadd.f32 %v930, %v896
  %v932 = vadd.f32 %v931, %v897
  %v933 = vadd.f32 %v932, %v898
  %v934 = vadd.f32 %v933, %v899
  %v935 = vadd.f32 %v934, %v900
  %v936 = vadd.f32 %v935, %v901
  %v937 = vadd.f32 %v936, %v902
  %v938 = vadd.f32 %v937, %v903
  %v939 = vadd.f32 %v938, %v904
  %v940 = vadd.f32 %v939, %v905
  %v941 = vadd.f32 %v940, %v906
  %v942 = vadd.f32 %v941, %v907
  %v943 = vadd.f32 %v942, %v908
  %v944 = vadd.f32 %v943, %v909
  %v945 = vadd.f32 %v944, %v910
  %v946 = vadd.f32 %v945, %v911
  %v947 = vadd.f32 %v946, %v912
  %v948 = vadd.f32 %v947, %v913
  %v949 = vadd.f32 %v948, %v914
  %v950 = vadd.f32 %v949, %v915
  %v951 = vadd.f32 %v950, %v916
  %v952 = vadd.f32 %v951, %v917
  %v953 = vadd.f32 %v952, %v918
  %v954 = vadd.f32 %v953, %v919
  %v955 = vadd.f32 %v954, %v920
  %v956 = vadd.f32 %v955, %v921
  %v957 = vrot.slane %v956, 4
  %v958 = vadd.f32 %v956, %v957
  %v959 = vrot.slane %v958, 2
  %v960 = vadd.f32 %v958, %v959
  %v961 = vrot.slane %v960, 1
  %v962 = vadd.f32 %v960, %v961
  %v963 = vld [vmem:[%s5] sm:$0xff]
  %v964 = vadd.f32 %v963, %v885
  %965 = vst [vmem:[%s5] sm:$0xff] %v964
  %v966 = vld [vmem:[%s6] sm:$0xff]
  %v967 = vadd.f32 %v966, %v962
  %968 = vst [vmem:[%s6] sm:$0xff] %v967
  %s969 = sadd.s32 0, 0
  %s970 = smul.u32 36, %s969
  %p971 = scmp.lt.s32.totalorder %s970, 35
  %s972 = scalar_select %p971, %s970, 35
  %s973 = smul.addr %s972, 4
  %s974 = scalar_lea.vmem %s4, %s973
  // Predicated region
  $region22: #{_lambda_.3} parent=0 // pred_check
    _
  $region23: #{_lambda_.3} parent=0 // pred_check_branch
    %976 = sbr.rel (0) target = $region25
  $region24: #{_lambda_.3} parent=0 // pred_region
    %s977 = sadd.s32 0, 0
    %s978 = smul.u32 36, %s977
  $region25: #{_lambda_.3} parent=0 // pred_fallthru
    _
  // Predicated region
  $region26: #{_lambda_.3} parent=0 // pred_check
    _
  $region27: #{_lambda_.3} parent=0 // pred_check_branch
    %980 = sbr.rel (0) target = $region29
  $region28: #{_lambda_.3} parent=0 // pred_region
    _
  $region29: #{_lambda_.3} parent=0 // pred_fallthru
    _
  // Predicated region
  $region30: #{_lambda_.3} parent=0 // pred_check
    _
  $region31: #{_lambda_.3} parent=0 // pred_check_branch
    %982 = sbr.rel (0) target = $region33
  $region32: #{_lambda_.3} parent=0 // pred_region
    _
  $region33: #{_lambda_.3} parent=0 // pred_fallthru
    _
  // Predicated region
  $region34: #{_lambda_.3} parent=0 // pred_check
    _
  $region35: #{_lambda_.3} parent=0 // pred_check_branch
    %984 = sbr.rel (0) target = $region37
  $region36: #{_lambda_.3} parent=0 // pred_region
    %s985 = sadd.s32 0, 0
    %s986 = smul.u32 36, %s985
    %p987 = scmp.lt.s32.totalorder %s986, 35
    %s988 = scalar_select %p987, %s986, 35
    %s989 = smul.addr %s988, 4
    %s990 = scalar_lea.vmem %s4, %s989
  $region37: #{_lambda_.3} parent=0 // pred_fallthru
    _
  // Predicated region
  $region38: #{_lambda_.3} parent=0 // pred_check
    _
  $region39: #{_lambda_.3} parent=0 // pred_check_branch
    %992 = sbr.rel (0) target = $region41
  $region40: #{_lambda_.3} parent=0 // pred_region
    _
  $region41: #{_lambda_.3} parent=0 // pred_fallthru
    _
  // Predicated region
  $region42: #{_lambda_.3} parent=0 // pred_check
    _
  $region43: #{_lambda_.3} parent=0 // pred_check_branch
    %994 = sbr.rel (0) target = $region45
  $region44: #{_lambda_.3} parent=0 // pred_region
    _
  $region45: #{_lambda_.3} parent=0 // pred_fallthru
    _

// kernel: _lambda_.5
$region0: #{_lambda_.5}
  #allocation0 [shape = 'u32[]', space=smem, size = 0x4, offset = 0x4, fixed_abs, tag = 'smem constant byte address 0x4 - core index']
  #allocation1 [shape = 'u32[144,128]{1,0:T(1,128)}', space=vmem, size = 0x12000, scoped, tag = 'internal scratch']
  %s0 = inlined_call_operand.vmem [shape: bf16[128,128], index: 0, kind: input, shape index: {}]
  %s1 = inlined_call_operand.vmem [shape: f32[1,128], index: 1, kind: input, shape index: {}]
  %s2 = inlined_call_operand.vmem [shape: f32[1,128], index: 2, kind: input, shape index: {}]
  %s3 = inlined_call_operand.vmem [shape: f32[128,128], index: 3, kind: output, shape index: {}]
  %s4 = sld [smem:[#allocation0]]
  $region22: #{_lambda_.5} parent=0
    _
  %s6 = ssub.s32 1, %s4
  %s7 = scalar_select 0, %s6, %s4
  // Predicated region
  $region2: #{_lambda_.5} parent=0 // pred_check
    _
  $region3: #{_lambda_.5} parent=0 // pred_check_branch
    %9 = sbr.rel (0) target = $region5
  $region4: #{_lambda_.5} parent=0 // pred_region
    _
  $region5: #{_lambda_.5} parent=0 // pred_fallthru
    _
  // Predicated region
  $region6: #{_lambda_.5} parent=0 // pred_check
    _
  $region7: #{_lambda_.5} parent=0 // pred_check_branch
    %11 = sbr.rel (0) target = $region9
  $region8: #{_lambda_.5} parent=0 // pred_region
    _
  $region9: #{_lambda_.5} parent=0 // pred_fallthru
    _
  // Predicated region
  $region10: #{_lambda_.5} parent=0 // pred_check
    _
  $region11: #{_lambda_.5} parent=0 // pred_check_branch
    %13 = sbr.rel (0) target = $region13
  $region12: #{_lambda_.5} parent=0 // pred_region
    _
  $region13: #{_lambda_.5} parent=0 // pred_fallthru
    _
  %v14 = vld [vmem:[%s0] sm:$0xf]
  %v15 = vld [vmem:[%s0 + $0x4] sm:$0xf]
  %v16 = vld [vmem:[%s0 + $0x8] sm:$0xf]
  %v17 = vld [vmem:[%s0 + $0xc] sm:$0xf]
  %v18 = vld [vmem:[%s0 + $0x10] sm:$0xf]
  %v19 = vld [vmem:[%s0 + $0x14] sm:$0xf]
  %v20 = vld [vmem:[%s0 + $0x18] sm:$0xf]
  %v21 = vld [vmem:[%s0 + $0x1c] sm:$0xf]
  %v22 = vld [vmem:[%s0 + $0x20] sm:$0xf]
  %v23 = vld [vmem:[%s0 + $0x24] sm:$0xf]
  %v24 = vld [vmem:[%s0 + $0x28] sm:$0xf]
  %v25 = vld [vmem:[%s0 + $0x2c] sm:$0xf]
  %v26 = vld [vmem:[%s0 + $0x30] sm:$0xf]
  %v27 = vld [vmem:[%s0 + $0x34] sm:$0xf]
  %v28 = vld [vmem:[%s0 + $0x38] sm:$0xf]
  %v29 = vld [vmem:[%s0 + $0x3c] sm:$0xf]
  %v30 = vunpack.c.l.bf16 %v14
  %v31 = vunpack.c.l.bf16 %v15
  %v32 = vunpack.c.l.bf16 %v16
  %v33 = vunpack.c.l.bf16 %v17
  %v34 = vunpack.c.l.bf16 %v18
  %v35 = vunpack.c.l.bf16 %v19
  %v36 = vunpack.c.l.bf16 %v20
  %v37 = vunpack.c.l.bf16 %v21
  %v38 = vunpack.c.l.bf16 %v22
  %v39 = vunpack.c.l.bf16 %v23
  %v40 = vunpack.c.l.bf16 %v24
  %v41 = vunpack.c.l.bf16 %v25
  %v42 = vunpack.c.l.bf16 %v26
  %v43 = vunpack.c.l.bf16 %v27
  %v44 = vunpack.c.l.bf16 %v28
  %v45 = vunpack.c.l.bf16 %v29
  %v46 = vld [vmem:[%s1] sm:$0x1]
  %v48 = vlaneseq
  %v49 = vshrl.u32 %v48, 7
  %v50 = vsub.s32 0, %v49
  %v51 = vrot.slane %v46, %v50
  %v53 = vmul.f32 %v30, %v51
  %v54 = vmul.f32 %v31, %v51
  %v55 = vmul.f32 %v32, %v51
  %v56 = vmul.f32 %v33, %v51
  %v57 = vmul.f32 %v34, %v51
  %v58 = vmul.f32 %v35, %v51
  %v59 = vmul.f32 %v36, %v51
  %v60 = vmul.f32 %v37, %v51
  %v61 = vmul.f32 %v38, %v51
  %v62 = vmul.f32 %v39, %v51
  %v63 = vmul.f32 %v40, %v51
  %v64 = vmul.f32 %v41, %v51
  %v65 = vmul.f32 %v42, %v51
  %v66 = vmul.f32 %v43, %v51
  %v67 = vmul.f32 %v44, %v51
  %v68 = vmul.f32 %v45, %v51
  %v69 = vld [vmem:[%s2] sm:$0x1]
  %v71 = vlaneseq
  %v72 = vshrl.u32 %v71, 7
  %v73 = vsub.s32 0, %v72
  %v74 = vrot.slane %v69, %v73
  %v76 = vadd.f32 %v53, %v74
  %v77 = vadd.f32 %v54, %v74
  %v78 = vadd.f32 %v55, %v74
  %v79 = vadd.f32 %v56, %v74
  %v80 = vadd.f32 %v57, %v74
  %v81 = vadd.f32 %v58, %v74
  %v82 = vadd.f32 %v59, %v74
  %v83 = vadd.f32 %v60, %v74
  %v84 = vadd.f32 %v61, %v74
  %v85 = vadd.f32 %v62, %v74
  %v86 = vadd.f32 %v63, %v74
  %v87 = vadd.f32 %v64, %v74
  %v88 = vadd.f32 %v65, %v74
  %v89 = vadd.f32 %v66, %v74
  %v90 = vadd.f32 %v67, %v74
  %v91 = vadd.f32 %v68, %v74
  %v92 = vmax.f32 %v76, 0.0
  %v93 = vmax.f32 %v77, 0.0
  %v94 = vmax.f32 %v78, 0.0
  %v95 = vmax.f32 %v79, 0.0
  %v96 = vmax.f32 %v80, 0.0
  %v97 = vmax.f32 %v81, 0.0
  %v98 = vmax.f32 %v82, 0.0
  %v99 = vmax.f32 %v83, 0.0
  %v100 = vmax.f32 %v84, 0.0
  %v101 = vmax.f32 %v85, 0.0
  %v102 = vmax.f32 %v86, 0.0
  %v103 = vmax.f32 %v87, 0.0
  %v104 = vmax.f32 %v88, 0.0
  %v105 = vmax.f32 %v89, 0.0
  %v106 = vmax.f32 %v90, 0.0
  %v107 = vmax.f32 %v91, 0.0
  %108 = vst [vmem:[%s3] sm:$0xff] %v92
  %109 = vst [vmem:[%s3 + $0x8] sm:$0xff] %v93
  %110 = vst [vmem:[%s3 + $0x10] sm:$0xff] %v94
  %111 = vst [vmem:[%s3 + $0x18] sm:$0xff] %v95
  %112 = vst [vmem:[%s3 + $0x20] sm:$0xff] %v96
  %113 = vst [vmem:[%s3 + $0x28] sm:$0xff] %v97
  %114 = vst [vmem:[%s3 + $0x30] sm:$0xff] %v98
  %115 = vst [vmem:[%s3 + $0x38] sm:$0xff] %v99
  %116 = vst [vmem:[%s3 + $0x40] sm:$0xff] %v100
  %117 = vst [vmem:[%s3 + $0x48] sm:$0xff] %v101
  %118 = vst [vmem:[%s3 + $0x50] sm:$0xff] %v102
  %119 = vst [vmem:[%s3 + $0x58] sm:$0xff] %v103
  %120 = vst [vmem:[%s3 + $0x60] sm:$0xff] %v104
  %121 = vst [vmem:[%s3 + $0x68] sm:$0xff] %v105
  %122 = vst [vmem:[%s3 + $0x70] sm:$0xff] %v106
  %123 = vst [vmem:[%s3 + $0x78] sm:$0xff] %v107
  // Predicated region
  $region14: #{_lambda_.5} parent=0 // pred_check
    _
  $region15: #{_lambda_.5} parent=0 // pred_check_branch
    %125 = sbr.rel (0) target = $region17
  $region16: #{_lambda_.5} parent=0 // pred_region
    _
  $region17: #{_lambda_.5} parent=0 // pred_fallthru
    _
  // Predicated region
  $region18: #{_lambda_.5} parent=0 // pred_check
    _
  $region19: #{_lambda_.5} parent=0 // pred_check_branch
    %127 = sbr.rel (0) target = $region21
  $region20: #{_lambda_.5} parent=0 // pred_region
    _
  $region21: #{_lambda_.5} parent=0 // pred_fallthru
    _

</llo_original>
